<compile_context>
chip_gen: v5e
topology: v5e:2x2
jax: 0.10.0
libtpu: 0.0.40
codegen_flags: <defaults>
</compile_context>

<pallas_src>
import functools

import jax
import jax.numpy as jnp
from jax import lax
from jax.experimental import pallas as pl
from jax.experimental.pallas import tpu as pltpu


def _round_up(x, m):
    return (x + m - 1) // m * m


def _linear_if_kernel(x_ref, w_ref, b_ref, st_ref, sc_ref,
                      pot_acc, sc_acc, st_acc, *, tb, t_valid, mask_time):
    """One grid step = one (Nb, Tb) block of (batch, time).

    x_ref  : (Nb, Tb, D_in)      input spike slab (narrow storage dtype)
    w_ref  : (D_in, D_out_p)     BN-folded weight (transposed), f32
    b_ref  : (1, D_out_p)        BN-folded bias, f32
    st_ref : (Nb, Tb, D_out_p)   output spike slab (narrow storage dtype)
    sc_ref : (Nb, D_out_p)       spike counts, f32 (resident over the T axis)
    pot_acc: (Nb, D_out_p)       membrane-potential carry (VMEM scratch, f32)
    sc_acc : (Nb, D_out_p)       spike-count carry        (VMEM scratch, f32)
    st_acc : (Nb, Tb, D_out_p)   f32 staging for the spike block
    """
    tblk = pl.program_id(1)

    @pl.when(tblk == 0)
    def _():
        # Membrane potential starts at the folded bias; counts start at zero.
        pot_acc[...] = jnp.broadcast_to(b_ref[...], pot_acc.shape)
        sc_acc[...] = jnp.zeros_like(sc_acc)

    nb = x_ref.shape[0]
    d_in = x_ref.shape[2]
    d_out = w_ref.shape[1]

    # One fused MXU matmul for the whole (Nb, Tb) slab — the recurrence only
    # couples timesteps through elementwise ops, never through the matmul.
    # 0/1 spikes are exact in bf16, so casting to f32 here is lossless and the
    # matmul matches the fp32 reference numerics.
    x = x_ref[...].astype(jnp.float32).reshape(nb * tb, d_in)
    pot_in = jnp.dot(x, w_ref[...], preferred_element_type=jnp.float32)
    pot_in = pot_in.reshape(nb, tb, d_out)

    pot = pot_acc[...]
    sc = sc_acc[...]
    t0 = tblk * tb
    for t in range(tb):                       # fully unrolled VPU recurrence
        pot = pot + pot_in[:, t, :]
        spike = (pot >= 1.0).astype(jnp.float32)   # torch.ge(pot, 1.0).float()
        st_acc[:, t, :] = spike
        if mask_time:
            # Padded timesteps (t0 + t >= t_valid) must not count.
            valid = (t0 + t < t_valid).astype(jnp.float32)
            sc = sc + spike * valid
        else:
            sc = sc + spike
        pot = pot - spike                          # soft reset

    pot_acc[...] = pot
    sc_acc[...] = sc

    # Single lane-dense, full-tile store of the spike block.
    st_ref[...] = st_acc[...].astype(st_ref.dtype)

    @pl.when(tblk == pl.num_programs(1) - 1)
    def _():
        sc_ref[...] = sc


def linear_if_pallas(x_st, w_norm, b_norm, *, spike_dtype=jnp.bfloat16):
    """x_st: (N, T, D_in) 0/1 spikes; w_norm: (D_out, D_in); b_norm: (D_out,).

    Returns (output_st, output_sc): output_st in `spike_dtype` (values are
    exactly 0/1, so bf16 storage is lossless), output_sc in float32.
    """
    N, T, D_in = x_st.shape
    D_out = w_norm.shape[0]

    # ---- tiling -------------------------------------------------------------
    D_out_p = _round_up(D_out, 128)                 # lane-dense output stores
    # sublane multiple for the spike storage dtype (f32: 8, bf16: 16, int8: 32)
    sub = 8 * (4 // jnp.dtype(spike_dtype).itemsize)
    Tb = min(_round_up(T, sub), max(sub, 32))       # time block (amortizes grid
    T_pad = _round_up(T, Tb)                        #   overhead, fills the MXU)
    Nb = min(_round_up(N, 8), 64)                   # batch block (parallel axis)
    N_pad = _round_up(N, Nb)
    # TODO(synk): for very large D_in/D_out the full (D_in, D_out_p) weight tile
    # will not fit VMEM; add a D_out tiling grid axis in that regime.

    # ---- prepare operands ---------------------------------------------------
    x = x_st.astype(spike_dtype)                    # 0/1 -> exact in bf16
    if (N_pad, T_pad) != (N, T):
        x = jnp.pad(x, ((0, N_pad - N), (0, T_pad - T), (0, 0)))

    w = w_norm.astype(jnp.float32)
    b = b_norm.astype(jnp.float32)
    if D_out_p != D_out:
        w = jnp.pad(w, ((0, D_out_p - D_out), (0, 0)))
        b = jnp.pad(b, ((0, D_out_p - D_out),))
    w_t = jnp.transpose(w)                          # (D_in, D_out_p)
    b2 = b[None, :]                                 # (1, D_out_p)

    grid = (N_pad // Nb, T_pad // Tb)

    # ---- VMEM budget (double-buffered blocks + scratch) ---------------------
    sp_bytes = jnp.dtype(spike_dtype).itemsize
    est = (2 * Nb * Tb * D_in * sp_bytes            # x slab (double buffered)
           + 2 * Nb * Tb * D_out_p * sp_bytes       # st slab
           + 2 * D_in * D_out_p * 4 + 2 * D_out_p * 4
           + 2 * Nb * D_out_p * 4                   # sc output block
           + 2 * Nb * D_out_p * 4                   # pot / sc scratch
           + 2 * Nb * Tb * D_out_p * 4)             # st staging + matmul result
    vmem_limit = int(min(max(2 * est, 32 * 1024 * 1024), 48 * 1024 * 1024))

    kernel = functools.partial(
        _linear_if_kernel, tb=Tb, t_valid=T, mask_time=(T_pad != T))

    st_p, sc_p = pl.pallas_call(
        kernel,
        out_shape=(
            jax.ShapeDtypeStruct((N_pad, T_pad, D_out_p), spike_dtype),
            jax.ShapeDtypeStruct((N_pad, D_out_p), jnp.float32),
        ),
        grid_spec=pltpu.PrefetchScalarGridSpec(
            num_scalar_prefetch=0,
            grid=grid,
            in_specs=[
                pl.BlockSpec((Nb, Tb, D_in), lambda n, t: (n, t, 0)),
                pl.BlockSpec((D_in, D_out_p), lambda n, t: (0, 0)),
                pl.BlockSpec((1, D_out_p), lambda n, t: (0, 0)),
            ],
            out_specs=(
                pl.BlockSpec((Nb, Tb, D_out_p), lambda n, t: (n, t, 0)),
                pl.BlockSpec((Nb, D_out_p), lambda n, t: (n, 0)),
            ),
            scratch_shapes=[
                pltpu.VMEM((Nb, D_out_p), jnp.float32),        # pot carry
                pltpu.VMEM((Nb, D_out_p), jnp.float32),        # spike-count carry
                pltpu.VMEM((Nb, Tb, D_out_p), jnp.float32),    # spike staging
            ],
        ),
        compiler_params=pltpu.CompilerParams(
            # Batch blocks are independent -> parallel (2 TCs on v7x);
            # the time axis carries pot/sc state -> arbitrary (sequential).
            dimension_semantics=("parallel", "arbitrary"),
            vmem_limit_bytes=vmem_limit,
        ),
    )(x, w_t, b2)

    output_st = st_p[:N, :T, :D_out]
    output_sc = sc_p[:N, :D_out]
    return output_st, output_sc


def linear_bn1d_forward(x_st, x_sc, params):
    """JAX port of LinearBN1d.forward (returns (output_st, output_sc))."""
    w, b, gamma, beta, r_mean, r_var = (
        params["weight"], params["bias"], params["gamma"],
        params["beta"], params["running_mean"], params["running_var"],
    )

    # ANN branch: relu(bn1d(linear(x_sc))).  In the PyTorch module this value
    # only feeds ctx.save_for_backward inside LinearIF and is NOT returned, so
    # it does not affect the forward outputs.  Computed (eval-mode BN,
    # eps=1e-4) just to mirror the module structure.
    lin = x_sc @ w.T + b
    bn = (lin - r_mean) / jnp.sqrt(r_var + 1e-4) * gamma + beta
    _ann_output = jnp.maximum(bn, 0.0)

    # Fold BN into the IF layer's weight / bias, exactly as in the module
    # (note: ratio uses sqrt(var) WITHOUT eps, matching the PyTorch code).
    ratio = gamma / jnp.sqrt(r_var)
    w_norm = w * ratio[:, None]
    b_norm = (b - r_mean) * ratio + beta

    return linear_if_pallas(x_st, w_norm, b_norm)


def _reference_forward(x_st, w_norm, b_norm):
    """Pure-JAX reference of LinearIF.forward for correctness checking."""
    N, T, _ = x_st.shape
    D_out = w_norm.shape[0]
    pot_in = jnp.einsum("ntd,od->nto", x_st, w_norm,
                        precision=lax.Precision.HIGHEST)
    pot = jnp.broadcast_to(b_norm, (N, D_out))
    spikes = []
    for t in range(T):
        pot = pot + pot_in[:, t, :]
        sp = (pot >= 1.0).astype(jnp.float32)
        spikes.append(sp)
        pot = pot - sp
    st = jnp.stack(spikes, axis=1)
    return st, jnp.sum(st, axis=1)


if __name__ == "__main__":
    N, T, D_in, D_out = 8, 8, 32, 64
    key = jax.random.PRNGKey(0)
    k_w, k_b, k_g, k_x = jax.random.split(key, 4)

    # Deterministic parameter init (shapes from LinearBN1d.__init__):
    #   nn.Linear(D_in, D_out): weight (D_out, D_in), bias (D_out,)
    #   nn.BatchNorm1d(D_out):  gamma ~ N(0, 2), beta = 0, running stats default
    bound = 1.0 / jnp.sqrt(D_in)
    params = {
        "weight": jax.random.uniform(k_w, (D_out, D_in), jnp.float32, -bound, bound),
        "bias": jax.random.uniform(k_b, (D_out,), jnp.float32, -bound, bound),
        "gamma": 2.0 * jax.random.normal(k_g, (D_out,), jnp.float32),
        "beta": jnp.zeros((D_out,), jnp.float32),
        "running_mean": jnp.zeros((D_out,), jnp.float32),
        "running_var": jnp.ones((D_out,), jnp.float32),
    }

    # Spike-train input (0/1) and its spike-count companion.
    x_st = jax.random.bernoulli(k_x, 0.3, (N, T, D_in)).astype(jnp.float32)
    x_sc = jnp.sum(x_st, axis=1)

    fwd = jax.jit(functools.partial(linear_bn1d_forward, params=params))
    out_st, out_sc = fwd(x_st, x_sc)
    jax.block_until_ready((out_st, out_sc))

    # Verify against the pure-JAX reference (spikes are exactly 0/1, so the
    # bf16-stored spike train compares exactly against the fp32 reference).
    ratio = params["gamma"] / jnp.sqrt(params["running_var"])
    w_norm = params["weight"] * ratio[:, None]
    b_norm = (params["bias"] - params["running_mean"]) * ratio + params["beta"]
    ref_st, ref_sc = _reference_forward(x_st, w_norm, b_norm)

    assert out_st.shape == (N, T, D_out) and out_sc.shape == (N, D_out)
    assert jnp.allclose(out_st.astype(jnp.float32), ref_st, atol=1e-5)
    assert jnp.allclose(out_sc, ref_sc, atol=1e-5)
    print("KERNEL_OK")
</pallas_src>

<mosaic_0001>
module attributes {stable_mosaic.version = 11 : i64} {
  func.func @_linear_if_kernel(%arg0: i32, %arg1: i32, %arg2: memref<8x16x32xbf16, #tpu.memory_space<vmem>>, %arg3: memref<32x128xf32, #tpu.memory_space<vmem>>, %arg4: memref<1x128xf32, #tpu.memory_space<vmem>>, %arg5: memref<8x16x128xbf16, #tpu.memory_space<vmem>>, %arg6: memref<8x128xf32, #tpu.memory_space<vmem>>, %arg7: memref<8x128xf32, #tpu.memory_space<vmem>>, %arg8: memref<8x128xf32, #tpu.memory_space<vmem>>, %arg9: memref<8x16x128xf32, #tpu.memory_space<vmem>>) attributes {dimension_semantics = [#tpu.dimension_semantics<parallel>, #tpu.dimension_semantics<arbitrary>], iteration_bounds = array<i64: 1, 1>, scalar_prefetch = 0 : i64, scratch_operands = 3 : i64, tpu.core_type = #tpu.core_type<tc>, window_params = [{transform_indices = @transform_0, window_bounds = array<i64: 8, 16, 32>}, {pipeline_mode = #tpu.pipeline_mode<synchronous>, transform_indices = @transform_1, window_bounds = array<i64: 32, 128>}, {pipeline_mode = #tpu.pipeline_mode<synchronous>, transform_indices = @transform_2, window_bounds = array<i64: 1, 128>}, {transform_indices = @transform_3, window_bounds = array<i64: 8, 16, 128>}, {transform_indices = @transform_4, window_bounds = array<i64: 8, 128>}]} {
    %c0_i32 = arith.constant 0 : i32
    %0 = arith.cmpi eq, %arg1, %c0_i32 : i32
    %1 = arith.extui %0 : i1 to i32
    %c0_i32_0 = arith.constant 0 : i32
    %2 = arith.cmpi ne, %1, %c0_i32_0 : i32
    scf.if %2 {
      %c0_87 = arith.constant 0 : index
      %c0_88 = arith.constant 0 : index
      %308 = vector.load %arg4[%c0_87, %c0_88] : memref<1x128xf32, #tpu.memory_space<vmem>>, vector<1x128xf32>
      %309 = vector.shape_cast %308 : vector<1x128xf32> to vector<1x128xf32>
      %310 = vector.broadcast %309 : vector<1x128xf32> to vector<8x128xf32>
      %c0_89 = arith.constant 0 : index
      %c0_90 = arith.constant 0 : index
      %311 = vector.load %arg7[%c0_89, %c0_90] : memref<8x128xf32, #tpu.memory_space<vmem>>, vector<8x128xf32>
      tpu.vector_store %arg7[%c0_89, %c0_90], %310 {strides = array<i32>} : memref<8x128xf32, #tpu.memory_space<vmem>>, vector<8x128xf32>,
      %cst_91 = arith.constant 0.000000e+00 : f32
      %312 = vector.broadcast %cst_91 : f32 to vector<8x128xf32>
      %c0_92 = arith.constant 0 : index
      %c0_93 = arith.constant 0 : index
      %313 = vector.load %arg8[%c0_92, %c0_93] : memref<8x128xf32, #tpu.memory_space<vmem>>, vector<8x128xf32>
      tpu.vector_store %arg8[%c0_92, %c0_93], %312 {strides = array<i32>} : memref<8x128xf32, #tpu.memory_space<vmem>>, vector<8x128xf32>,
    } else {
    }
    %c0 = arith.constant 0 : index
    %c0_1 = arith.constant 0 : index
    %c0_2 = arith.constant 0 : index
    %3 = vector.load %arg2[%c0, %c0_1, %c0_2] : memref<8x16x32xbf16, #tpu.memory_space<vmem>>, vector<8x16x32xbf16>
    %4 = arith.extf %3 : vector<8x16x32xbf16> to vector<8x16x32xf32>
    %5 = vector.shape_cast %4 : vector<8x16x32xf32> to vector<128x32xf32>
    %c0_3 = arith.constant 0 : index
    %c0_4 = arith.constant 0 : index
    %6 = vector.load %arg3[%c0_3, %c0_4] : memref<32x128xf32, #tpu.memory_space<vmem>>, vector<32x128xf32>
    %cst = arith.constant dense<0.000000e+00> : vector<128x128xf32>
    %7 = tpu.matmul %5, %6, %cst {dimension_numbers = #tpu.dot_dimension_numbers<[1], [0], [0], [1], [0, 0, 1, 1], [], []>} : vector<128x32xf32>, vector<32x128xf32>, vector<128x128xf32> -> vector<128x128xf32>
    %8 = vector.shape_cast %7 : vector<128x128xf32> to vector<8x16x128xf32>
    %c0_5 = arith.constant 0 : index
    %c0_6 = arith.constant 0 : index
    %9 = vector.load %arg7[%c0_5, %c0_6] : memref<8x128xf32, #tpu.memory_space<vmem>>, vector<8x128xf32>
    %c0_7 = arith.constant 0 : index
    %c0_8 = arith.constant 0 : index
    %10 = vector.load %arg8[%c0_7, %c0_8] : memref<8x128xf32, #tpu.memory_space<vmem>>, vector<8x128xf32>
    %c16_i32 = arith.constant 16 : i32
    %11 = arith.muli %arg1, %c16_i32 : i32
    %12 = vector.extract_strided_slice %8 {offsets = [0, 0, 0], sizes = [8, 1, 128], strides = [1, 1, 1]} : vector<8x16x128xf32> to vector<8x1x128xf32>
    %13 = vector.shape_cast %12 : vector<8x1x128xf32> to vector<8x128xf32>
    %14 = arith.addf %9, %13 : vector<8x128xf32>
    %cst_9 = arith.constant 1.000000e+00 : f32
    %15 = vector.broadcast %cst_9 : f32 to vector<8x128xf32>
    %16 = arith.cmpf oge, %14, %15 : vector<8x128xf32>
    %17 = arith.extui %16 : vector<8x128xi1> to vector<8x128xi32>
    %18 = arith.sitofp %17 : vector<8x128xi32> to vector<8x128xf32>
    %c0_10 = arith.constant 0 : index
    %c0_11 = arith.constant 0 : index
    %c0_12 = arith.constant 0 : index
    %19 = vector.load %arg9[%c0_10, %c0_11, %c0_12] : memref<8x16x128xf32, #tpu.memory_space<vmem>>, vector<8x1x128xf32>
    %20 = vector.shape_cast %19 : vector<8x1x128xf32> to vector<8x128xf32>
    %21 = vector.shape_cast %18 : vector<8x128xf32> to vector<8x1x128xf32>
    tpu.vector_store %arg9[%c0_10, %c0_11, %c0_12], %21 {strides = array<i32>} : memref<8x16x128xf32, #tpu.memory_space<vmem>>, vector<8x1x128xf32>,
    %c0_i32_13 = arith.constant 0 : i32
    %22 = arith.addi %11, %c0_i32_13 : i32
    %c8_i32 = arith.constant 8 : i32
    %23 = arith.cmpi slt, %22, %c8_i32 : i32
    %24 = arith.extui %23 : i1 to i32
    %25 = arith.sitofp %24 : i32 to f32
    %26 = vector.broadcast %25 : f32 to vector<8x128xf32>
    %27 = arith.mulf %18, %26 : vector<8x128xf32>
    %28 = arith.addf %10, %27 : vector<8x128xf32>
    %29 = arith.subf %14, %18 : vector<8x128xf32>
    %30 = vector.extract_strided_slice %8 {offsets = [0, 1, 0], sizes = [8, 1, 128], strides = [1, 1, 1]} : vector<8x16x128xf32> to vector<8x1x128xf32>
    %31 = vector.shape_cast %30 : vector<8x1x128xf32> to vector<8x128xf32>
    %32 = arith.addf %29, %31 : vector<8x128xf32>
    %cst_14 = arith.constant 1.000000e+00 : f32
    %33 = vector.broadcast %cst_14 : f32 to vector<8x128xf32>
    %34 = arith.cmpf oge, %32, %33 : vector<8x128xf32>
    %35 = arith.extui %34 : vector<8x128xi1> to vector<8x128xi32>
    %36 = arith.sitofp %35 : vector<8x128xi32> to vector<8x128xf32>
    %c0_15 = arith.constant 0 : index
    %c1 = arith.constant 1 : index
    %c0_16 = arith.constant 0 : index
    %37 = vector.load %arg9[%c0_15, %c1, %c0_16] : memref<8x16x128xf32, #tpu.memory_space<vmem>>, vector<8x1x128xf32>
    %38 = vector.shape_cast %37 : vector<8x1x128xf32> to vector<8x128xf32>
    %39 = vector.shape_cast %36 : vector<8x128xf32> to vector<8x1x128xf32>
    tpu.vector_store %arg9[%c0_15, %c1, %c0_16], %39 {strides = array<i32>} : memref<8x16x128xf32, #tpu.memory_space<vmem>>, vector<8x1x128xf32>,
    %c1_i32 = arith.constant 1 : i32
    %40 = arith.addi %11, %c1_i32 : i32
    %c8_i32_17 = arith.constant 8 : i32
    %41 = arith.cmpi slt, %40, %c8_i32_17 : i32
    %42 = arith.extui %41 : i1 to i32
    %43 = arith.sitofp %42 : i32 to f32
    %44 = vector.broadcast %43 : f32 to vector<8x128xf32>
    %45 = arith.mulf %36, %44 : vector<8x128xf32>
    %46 = arith.addf %28, %45 : vector<8x128xf32>
    %47 = arith.subf %32, %36 : vector<8x128xf32>
    %48 = vector.extract_strided_slice %8 {offsets = [0, 2, 0], sizes = [8, 1, 128], strides = [1, 1, 1]} : vector<8x16x128xf32> to vector<8x1x128xf32>
    %49 = vector.shape_cast %48 : vector<8x1x128xf32> to vector<8x128xf32>
    %50 = arith.addf %47, %49 : vector<8x128xf32>
    %cst_18 = arith.constant 1.000000e+00 : f32
    %51 = vector.broadcast %cst_18 : f32 to vector<8x128xf32>
    %52 = arith.cmpf oge, %50, %51 : vector<8x128xf32>
    %53 = arith.extui %52 : vector<8x128xi1> to vector<8x128xi32>
    %54 = arith.sitofp %53 : vector<8x128xi32> to vector<8x128xf32>
    %c0_19 = arith.constant 0 : index
    %c2 = arith.constant 2 : index
    %c0_20 = arith.constant 0 : index
    %55 = vector.load %arg9[%c0_19, %c2, %c0_20] : memref<8x16x128xf32, #tpu.memory_space<vmem>>, vector<8x1x128xf32>
    %56 = vector.shape_cast %55 : vector<8x1x128xf32> to vector<8x128xf32>
    %57 = vector.shape_cast %54 : vector<8x128xf32> to vector<8x1x128xf32>
    tpu.vector_store %arg9[%c0_19, %c2, %c0_20], %57 {strides = array<i32>} : memref<8x16x128xf32, #tpu.memory_space<vmem>>, vector<8x1x128xf32>,
    %c2_i32 = arith.constant 2 : i32
    %58 = arith.addi %11, %c2_i32 : i32
    %c8_i32_21 = arith.constant 8 : i32
    %59 = arith.cmpi slt, %58, %c8_i32_21 : i32
    %60 = arith.extui %59 : i1 to i32
    %61 = arith.sitofp %60 : i32 to f32
    %62 = vector.broadcast %61 : f32 to vector<8x128xf32>
    %63 = arith.mulf %54, %62 : vector<8x128xf32>
    %64 = arith.addf %46, %63 : vector<8x128xf32>
    %65 = arith.subf %50, %54 : vector<8x128xf32>
    %66 = vector.extract_strided_slice %8 {offsets = [0, 3, 0], sizes = [8, 1, 128], strides = [1, 1, 1]} : vector<8x16x128xf32> to vector<8x1x128xf32>
    %67 = vector.shape_cast %66 : vector<8x1x128xf32> to vector<8x128xf32>
    %68 = arith.addf %65, %67 : vector<8x128xf32>
    %cst_22 = arith.constant 1.000000e+00 : f32
    %69 = vector.broadcast %cst_22 : f32 to vector<8x128xf32>
    %70 = arith.cmpf oge, %68, %69 : vector<8x128xf32>
    %71 = arith.extui %70 : vector<8x128xi1> to vector<8x128xi32>
    %72 = arith.sitofp %71 : vector<8x128xi32> to vector<8x128xf32>
    %c0_23 = arith.constant 0 : index
    %c3 = arith.constant 3 : index
    %c0_24 = arith.constant 0 : index
    %73 = vector.load %arg9[%c0_23, %c3, %c0_24] : memref<8x16x128xf32, #tpu.memory_space<vmem>>, vector<8x1x128xf32>
    %74 = vector.shape_cast %73 : vector<8x1x128xf32> to vector<8x128xf32>
    %75 = vector.shape_cast %72 : vector<8x128xf32> to vector<8x1x128xf32>
    tpu.vector_store %arg9[%c0_23, %c3, %c0_24], %75 {strides = array<i32>} : memref<8x16x128xf32, #tpu.memory_space<vmem>>, vector<8x1x128xf32>,
    %c3_i32 = arith.constant 3 : i32
    %76 = arith.addi %11, %c3_i32 : i32
    %c8_i32_25 = arith.constant 8 : i32
    %77 = arith.cmpi slt, %76, %c8_i32_25 : i32
    %78 = arith.extui %77 : i1 to i32
    %79 = arith.sitofp %78 : i32 to f32
    %80 = vector.broadcast %79 : f32 to vector<8x128xf32>
    %81 = arith.mulf %72, %80 : vector<8x128xf32>
    %82 = arith.addf %64, %81 : vector<8x128xf32>
    %83 = arith.subf %68, %72 : vector<8x128xf32>
    %84 = vector.extract_strided_slice %8 {offsets = [0, 4, 0], sizes = [8, 1, 128], strides = [1, 1, 1]} : vector<8x16x128xf32> to vector<8x1x128xf32>
    %85 = vector.shape_cast %84 : vector<8x1x128xf32> to vector<8x128xf32>
    %86 = arith.addf %83, %85 : vector<8x128xf32>
    %cst_26 = arith.constant 1.000000e+00 : f32
    %87 = vector.broadcast %cst_26 : f32 to vector<8x128xf32>
    %88 = arith.cmpf oge, %86, %87 : vector<8x128xf32>
    %89 = arith.extui %88 : vector<8x128xi1> to vector<8x128xi32>
    %90 = arith.sitofp %89 : vector<8x128xi32> to vector<8x128xf32>
    %c0_27 = arith.constant 0 : index
    %c4 = arith.constant 4 : index
    %c0_28 = arith.constant 0 : index
    %91 = vector.load %arg9[%c0_27, %c4, %c0_28] : memref<8x16x128xf32, #tpu.memory_space<vmem>>, vector<8x1x128xf32>
    %92 = vector.shape_cast %91 : vector<8x1x128xf32> to vector<8x128xf32>
    %93 = vector.shape_cast %90 : vector<8x128xf32> to vector<8x1x128xf32>
    tpu.vector_store %arg9[%c0_27, %c4, %c0_28], %93 {strides = array<i32>} : memref<8x16x128xf32, #tpu.memory_space<vmem>>, vector<8x1x128xf32>,
    %c4_i32 = arith.constant 4 : i32
    %94 = arith.addi %11, %c4_i32 : i32
    %c8_i32_29 = arith.constant 8 : i32
    %95 = arith.cmpi slt, %94, %c8_i32_29 : i32
    %96 = arith.extui %95 : i1 to i32
    %97 = arith.sitofp %96 : i32 to f32
    %98 = vector.broadcast %97 : f32 to vector<8x128xf32>
    %99 = arith.mulf %90, %98 : vector<8x128xf32>
    %100 = arith.addf %82, %99 : vector<8x128xf32>
    %101 = arith.subf %86, %90 : vector<8x128xf32>
    %102 = vector.extract_strided_slice %8 {offsets = [0, 5, 0], sizes = [8, 1, 128], strides = [1, 1, 1]} : vector<8x16x128xf32> to vector<8x1x128xf32>
    %103 = vector.shape_cast %102 : vector<8x1x128xf32> to vector<8x128xf32>
    %104 = arith.addf %101, %103 : vector<8x128xf32>
    %cst_30 = arith.constant 1.000000e+00 : f32
    %105 = vector.broadcast %cst_30 : f32 to vector<8x128xf32>
    %106 = arith.cmpf oge, %104, %105 : vector<8x128xf32>
    %107 = arith.extui %106 : vector<8x128xi1> to vector<8x128xi32>
    %108 = arith.sitofp %107 : vector<8x128xi32> to vector<8x128xf32>
    %c0_31 = arith.constant 0 : index
    %c5 = arith.constant 5 : index
    %c0_32 = arith.constant 0 : index
    %109 = vector.load %arg9[%c0_31, %c5, %c0_32] : memref<8x16x128xf32, #tpu.memory_space<vmem>>, vector<8x1x128xf32>
    %110 = vector.shape_cast %109 : vector<8x1x128xf32> to vector<8x128xf32>
    %111 = vector.shape_cast %108 : vector<8x128xf32> to vector<8x1x128xf32>
    tpu.vector_store %arg9[%c0_31, %c5, %c0_32], %111 {strides = array<i32>} : memref<8x16x128xf32, #tpu.memory_space<vmem>>, vector<8x1x128xf32>,
    %c5_i32 = arith.constant 5 : i32
    %112 = arith.addi %11, %c5_i32 : i32
    %c8_i32_33 = arith.constant 8 : i32
    %113 = arith.cmpi slt, %112, %c8_i32_33 : i32
    %114 = arith.extui %113 : i1 to i32
    %115 = arith.sitofp %114 : i32 to f32
    %116 = vector.broadcast %115 : f32 to vector<8x128xf32>
    %117 = arith.mulf %108, %116 : vector<8x128xf32>
    %118 = arith.addf %100, %117 : vector<8x128xf32>
    %119 = arith.subf %104, %108 : vector<8x128xf32>
    %120 = vector.extract_strided_slice %8 {offsets = [0, 6, 0], sizes = [8, 1, 128], strides = [1, 1, 1]} : vector<8x16x128xf32> to vector<8x1x128xf32>
    %121 = vector.shape_cast %120 : vector<8x1x128xf32> to vector<8x128xf32>
    %122 = arith.addf %119, %121 : vector<8x128xf32>
    %cst_34 = arith.constant 1.000000e+00 : f32
    %123 = vector.broadcast %cst_34 : f32 to vector<8x128xf32>
    %124 = arith.cmpf oge, %122, %123 : vector<8x128xf32>
    %125 = arith.extui %124 : vector<8x128xi1> to vector<8x128xi32>
    %126 = arith.sitofp %125 : vector<8x128xi32> to vector<8x128xf32>
    %c0_35 = arith.constant 0 : index
    %c6 = arith.constant 6 : index
    %c0_36 = arith.constant 0 : index
    %127 = vector.load %arg9[%c0_35, %c6, %c0_36] : memref<8x16x128xf32, #tpu.memory_space<vmem>>, vector<8x1x128xf32>
    %128 = vector.shape_cast %127 : vector<8x1x128xf32> to vector<8x128xf32>
    %129 = vector.shape_cast %126 : vector<8x128xf32> to vector<8x1x128xf32>
    tpu.vector_store %arg9[%c0_35, %c6, %c0_36], %129 {strides = array<i32>} : memref<8x16x128xf32, #tpu.memory_space<vmem>>, vector<8x1x128xf32>,
    %c6_i32 = arith.constant 6 : i32
    %130 = arith.addi %11, %c6_i32 : i32
    %c8_i32_37 = arith.constant 8 : i32
    %131 = arith.cmpi slt, %130, %c8_i32_37 : i32
    %132 = arith.extui %131 : i1 to i32
    %133 = arith.sitofp %132 : i32 to f32
    %134 = vector.broadcast %133 : f32 to vector<8x128xf32>
    %135 = arith.mulf %126, %134 : vector<8x128xf32>
    %136 = arith.addf %118, %135 : vector<8x128xf32>
    %137 = arith.subf %122, %126 : vector<8x128xf32>
    %138 = vector.extract_strided_slice %8 {offsets = [0, 7, 0], sizes = [8, 1, 128], strides = [1, 1, 1]} : vector<8x16x128xf32> to vector<8x1x128xf32>
    %139 = vector.shape_cast %138 : vector<8x1x128xf32> to vector<8x128xf32>
    %140 = arith.addf %137, %139 : vector<8x128xf32>
    %cst_38 = arith.constant 1.000000e+00 : f32
    %141 = vector.broadcast %cst_38 : f32 to vector<8x128xf32>
    %142 = arith.cmpf oge, %140, %141 : vector<8x128xf32>
    %143 = arith.extui %142 : vector<8x128xi1> to vector<8x128xi32>
    %144 = arith.sitofp %143 : vector<8x128xi32> to vector<8x128xf32>
    %c0_39 = arith.constant 0 : index
    %c7 = arith.constant 7 : index
    %c0_40 = arith.constant 0 : index
    %145 = vector.load %arg9[%c0_39, %c7, %c0_40] : memref<8x16x128xf32, #tpu.memory_space<vmem>>, vector<8x1x128xf32>
    %146 = vector.shape_cast %145 : vector<8x1x128xf32> to vector<8x128xf32>
    %147 = vector.shape_cast %144 : vector<8x128xf32> to vector<8x1x128xf32>
    tpu.vector_store %arg9[%c0_39, %c7, %c0_40], %147 {strides = array<i32>} : memref<8x16x128xf32, #tpu.memory_space<vmem>>, vector<8x1x128xf32>,
    %c7_i32 = arith.constant 7 : i32
    %148 = arith.addi %11, %c7_i32 : i32
    %c8_i32_41 = arith.constant 8 : i32
    %149 = arith.cmpi slt, %148, %c8_i32_41 : i32
    %150 = arith.extui %149 : i1 to i32
    %151 = arith.sitofp %150 : i32 to f32
    %152 = vector.broadcast %151 : f32 to vector<8x128xf32>
    %153 = arith.mulf %144, %152 : vector<8x128xf32>
    %154 = arith.addf %136, %153 : vector<8x128xf32>
    %155 = arith.subf %140, %144 : vector<8x128xf32>
    %156 = vector.extract_strided_slice %8 {offsets = [0, 8, 0], sizes = [8, 1, 128], strides = [1, 1, 1]} : vector<8x16x128xf32> to vector<8x1x128xf32>
    %157 = vector.shape_cast %156 : vector<8x1x128xf32> to vector<8x128xf32>
    %158 = arith.addf %155, %157 : vector<8x128xf32>
    %cst_42 = arith.constant 1.000000e+00 : f32
    %159 = vector.broadcast %cst_42 : f32 to vector<8x128xf32>
    %160 = arith.cmpf oge, %158, %159 : vector<8x128xf32>
    %161 = arith.extui %160 : vector<8x128xi1> to vector<8x128xi32>
    %162 = arith.sitofp %161 : vector<8x128xi32> to vector<8x128xf32>
    %c0_43 = arith.constant 0 : index
    %c8 = arith.constant 8 : index
    %c0_44 = arith.constant 0 : index
    %163 = vector.load %arg9[%c0_43, %c8, %c0_44] : memref<8x16x128xf32, #tpu.memory_space<vmem>>, vector<8x1x128xf32>
    %164 = vector.shape_cast %163 : vector<8x1x128xf32> to vector<8x128xf32>
    %165 = vector.shape_cast %162 : vector<8x128xf32> to vector<8x1x128xf32>
    tpu.vector_store %arg9[%c0_43, %c8, %c0_44], %165 {strides = array<i32>} : memref<8x16x128xf32, #tpu.memory_space<vmem>>, vector<8x1x128xf32>,
    %c8_i32_45 = arith.constant 8 : i32
    %166 = arith.addi %11, %c8_i32_45 : i32
    %c8_i32_46 = arith.constant 8 : i32
    %167 = arith.cmpi slt, %166, %c8_i32_46 : i32
    %168 = arith.extui %167 : i1 to i32
    %169 = arith.sitofp %168 : i32 to f32
    %170 = vector.broadcast %169 : f32 to vector<8x128xf32>
    %171 = arith.mulf %162, %170 : vector<8x128xf32>
    %172 = arith.addf %154, %171 : vector<8x128xf32>
    %173 = arith.subf %158, %162 : vector<8x128xf32>
    %174 = vector.extract_strided_slice %8 {offsets = [0, 9, 0], sizes = [8, 1, 128], strides = [1, 1, 1]} : vector<8x16x128xf32> to vector<8x1x128xf32>
    %175 = vector.shape_cast %174 : vector<8x1x128xf32> to vector<8x128xf32>
    %176 = arith.addf %173, %175 : vector<8x128xf32>
    %cst_47 = arith.constant 1.000000e+00 : f32
    %177 = vector.broadcast %cst_47 : f32 to vector<8x128xf32>
    %178 = arith.cmpf oge, %176, %177 : vector<8x128xf32>
    %179 = arith.extui %178 : vector<8x128xi1> to vector<8x128xi32>
    %180 = arith.sitofp %179 : vector<8x128xi32> to vector<8x128xf32>
    %c0_48 = arith.constant 0 : index
    %c9 = arith.constant 9 : index
    %c0_49 = arith.constant 0 : index
    %181 = vector.load %arg9[%c0_48, %c9, %c0_49] : memref<8x16x128xf32, #tpu.memory_space<vmem>>, vector<8x1x128xf32>
    %182 = vector.shape_cast %181 : vector<8x1x128xf32> to vector<8x128xf32>
    %183 = vector.shape_cast %180 : vector<8x128xf32> to vector<8x1x128xf32>
    tpu.vector_store %arg9[%c0_48, %c9, %c0_49], %183 {strides = array<i32>} : memref<8x16x128xf32, #tpu.memory_space<vmem>>, vector<8x1x128xf32>,
    %c9_i32 = arith.constant 9 : i32
    %184 = arith.addi %11, %c9_i32 : i32
    %c8_i32_50 = arith.constant 8 : i32
    %185 = arith.cmpi slt, %184, %c8_i32_50 : i32
    %186 = arith.extui %185 : i1 to i32
    %187 = arith.sitofp %186 : i32 to f32
    %188 = vector.broadcast %187 : f32 to vector<8x128xf32>
    %189 = arith.mulf %180, %188 : vector<8x128xf32>
    %190 = arith.addf %172, %189 : vector<8x128xf32>
    %191 = arith.subf %176, %180 : vector<8x128xf32>
    %192 = vector.extract_strided_slice %8 {offsets = [0, 10, 0], sizes = [8, 1, 128], strides = [1, 1, 1]} : vector<8x16x128xf32> to vector<8x1x128xf32>
    %193 = vector.shape_cast %192 : vector<8x1x128xf32> to vector<8x128xf32>
    %194 = arith.addf %191, %193 : vector<8x128xf32>
    %cst_51 = arith.constant 1.000000e+00 : f32
    %195 = vector.broadcast %cst_51 : f32 to vector<8x128xf32>
    %196 = arith.cmpf oge, %194, %195 : vector<8x128xf32>
    %197 = arith.extui %196 : vector<8x128xi1> to vector<8x128xi32>
    %198 = arith.sitofp %197 : vector<8x128xi32> to vector<8x128xf32>
    %c0_52 = arith.constant 0 : index
    %c10 = arith.constant 10 : index
    %c0_53 = arith.constant 0 : index
    %199 = vector.load %arg9[%c0_52, %c10, %c0_53] : memref<8x16x128xf32, #tpu.memory_space<vmem>>, vector<8x1x128xf32>
    %200 = vector.shape_cast %199 : vector<8x1x128xf32> to vector<8x128xf32>
    %201 = vector.shape_cast %198 : vector<8x128xf32> to vector<8x1x128xf32>
    tpu.vector_store %arg9[%c0_52, %c10, %c0_53], %201 {strides = array<i32>} : memref<8x16x128xf32, #tpu.memory_space<vmem>>, vector<8x1x128xf32>,
    %c10_i32 = arith.constant 10 : i32
    %202 = arith.addi %11, %c10_i32 : i32
    %c8_i32_54 = arith.constant 8 : i32
    %203 = arith.cmpi slt, %202, %c8_i32_54 : i32
    %204 = arith.extui %203 : i1 to i32
    %205 = arith.sitofp %204 : i32 to f32
    %206 = vector.broadcast %205 : f32 to vector<8x128xf32>
    %207 = arith.mulf %198, %206 : vector<8x128xf32>
    %208 = arith.addf %190, %207 : vector<8x128xf32>
    %209 = arith.subf %194, %198 : vector<8x128xf32>
    %210 = vector.extract_strided_slice %8 {offsets = [0, 11, 0], sizes = [8, 1, 128], strides = [1, 1, 1]} : vector<8x16x128xf32> to vector<8x1x128xf32>
    %211 = vector.shape_cast %210 : vector<8x1x128xf32> to vector<8x128xf32>
    %212 = arith.addf %209, %211 : vector<8x128xf32>
    %cst_55 = arith.constant 1.000000e+00 : f32
    %213 = vector.broadcast %cst_55 : f32 to vector<8x128xf32>
    %214 = arith.cmpf oge, %212, %213 : vector<8x128xf32>
    %215 = arith.extui %214 : vector<8x128xi1> to vector<8x128xi32>
    %216 = arith.sitofp %215 : vector<8x128xi32> to vector<8x128xf32>
    %c0_56 = arith.constant 0 : index
    %c11 = arith.constant 11 : index
    %c0_57 = arith.constant 0 : index
    %217 = vector.load %arg9[%c0_56, %c11, %c0_57] : memref<8x16x128xf32, #tpu.memory_space<vmem>>, vector<8x1x128xf32>
    %218 = vector.shape_cast %217 : vector<8x1x128xf32> to vector<8x128xf32>
    %219 = vector.shape_cast %216 : vector<8x128xf32> to vector<8x1x128xf32>
    tpu.vector_store %arg9[%c0_56, %c11, %c0_57], %219 {strides = array<i32>} : memref<8x16x128xf32, #tpu.memory_space<vmem>>, vector<8x1x128xf32>,
    %c11_i32 = arith.constant 11 : i32
    %220 = arith.addi %11, %c11_i32 : i32
    %c8_i32_58 = arith.constant 8 : i32
    %221 = arith.cmpi slt, %220, %c8_i32_58 : i32
    %222 = arith.extui %221 : i1 to i32
    %223 = arith.sitofp %222 : i32 to f32
    %224 = vector.broadcast %223 : f32 to vector<8x128xf32>
    %225 = arith.mulf %216, %224 : vector<8x128xf32>
    %226 = arith.addf %208, %225 : vector<8x128xf32>
    %227 = arith.subf %212, %216 : vector<8x128xf32>
    %228 = vector.extract_strided_slice %8 {offsets = [0, 12, 0], sizes = [8, 1, 128], strides = [1, 1, 1]} : vector<8x16x128xf32> to vector<8x1x128xf32>
    %229 = vector.shape_cast %228 : vector<8x1x128xf32> to vector<8x128xf32>
    %230 = arith.addf %227, %229 : vector<8x128xf32>
    %cst_59 = arith.constant 1.000000e+00 : f32
    %231 = vector.broadcast %cst_59 : f32 to vector<8x128xf32>
    %232 = arith.cmpf oge, %230, %231 : vector<8x128xf32>
    %233 = arith.extui %232 : vector<8x128xi1> to vector<8x128xi32>
    %234 = arith.sitofp %233 : vector<8x128xi32> to vector<8x128xf32>
    %c0_60 = arith.constant 0 : index
    %c12 = arith.constant 12 : index
    %c0_61 = arith.constant 0 : index
    %235 = vector.load %arg9[%c0_60, %c12, %c0_61] : memref<8x16x128xf32, #tpu.memory_space<vmem>>, vector<8x1x128xf32>
    %236 = vector.shape_cast %235 : vector<8x1x128xf32> to vector<8x128xf32>
    %237 = vector.shape_cast %234 : vector<8x128xf32> to vector<8x1x128xf32>
    tpu.vector_store %arg9[%c0_60, %c12, %c0_61], %237 {strides = array<i32>} : memref<8x16x128xf32, #tpu.memory_space<vmem>>, vector<8x1x128xf32>,
    %c12_i32 = arith.constant 12 : i32
    %238 = arith.addi %11, %c12_i32 : i32
    %c8_i32_62 = arith.constant 8 : i32
    %239 = arith.cmpi slt, %238, %c8_i32_62 : i32
    %240 = arith.extui %239 : i1 to i32
    %241 = arith.sitofp %240 : i32 to f32
    %242 = vector.broadcast %241 : f32 to vector<8x128xf32>
    %243 = arith.mulf %234, %242 : vector<8x128xf32>
    %244 = arith.addf %226, %243 : vector<8x128xf32>
    %245 = arith.subf %230, %234 : vector<8x128xf32>
    %246 = vector.extract_strided_slice %8 {offsets = [0, 13, 0], sizes = [8, 1, 128], strides = [1, 1, 1]} : vector<8x16x128xf32> to vector<8x1x128xf32>
    %247 = vector.shape_cast %246 : vector<8x1x128xf32> to vector<8x128xf32>
    %248 = arith.addf %245, %247 : vector<8x128xf32>
    %cst_63 = arith.constant 1.000000e+00 : f32
    %249 = vector.broadcast %cst_63 : f32 to vector<8x128xf32>
    %250 = arith.cmpf oge, %248, %249 : vector<8x128xf32>
    %251 = arith.extui %250 : vector<8x128xi1> to vector<8x128xi32>
    %252 = arith.sitofp %251 : vector<8x128xi32> to vector<8x128xf32>
    %c0_64 = arith.constant 0 : index
    %c13 = arith.constant 13 : index
    %c0_65 = arith.constant 0 : index
    %253 = vector.load %arg9[%c0_64, %c13, %c0_65] : memref<8x16x128xf32, #tpu.memory_space<vmem>>, vector<8x1x128xf32>
    %254 = vector.shape_cast %253 : vector<8x1x128xf32> to vector<8x128xf32>
    %255 = vector.shape_cast %252 : vector<8x128xf32> to vector<8x1x128xf32>
    tpu.vector_store %arg9[%c0_64, %c13, %c0_65], %255 {strides = array<i32>} : memref<8x16x128xf32, #tpu.memory_space<vmem>>, vector<8x1x128xf32>,
    %c13_i32 = arith.constant 13 : i32
    %256 = arith.addi %11, %c13_i32 : i32
    %c8_i32_66 = arith.constant 8 : i32
    %257 = arith.cmpi slt, %256, %c8_i32_66 : i32
    %258 = arith.extui %257 : i1 to i32
    %259 = arith.sitofp %258 : i32 to f32
    %260 = vector.broadcast %259 : f32 to vector<8x128xf32>
    %261 = arith.mulf %252, %260 : vector<8x128xf32>
    %262 = arith.addf %244, %261 : vector<8x128xf32>
    %263 = arith.subf %248, %252 : vector<8x128xf32>
    %264 = vector.extract_strided_slice %8 {offsets = [0, 14, 0], sizes = [8, 1, 128], strides = [1, 1, 1]} : vector<8x16x128xf32> to vector<8x1x128xf32>
    %265 = vector.shape_cast %264 : vector<8x1x128xf32> to vector<8x128xf32>
    %266 = arith.addf %263, %265 : vector<8x128xf32>
    %cst_67 = arith.constant 1.000000e+00 : f32
    %267 = vector.broadcast %cst_67 : f32 to vector<8x128xf32>
    %268 = arith.cmpf oge, %266, %267 : vector<8x128xf32>
    %269 = arith.extui %268 : vector<8x128xi1> to vector<8x128xi32>
    %270 = arith.sitofp %269 : vector<8x128xi32> to vector<8x128xf32>
    %c0_68 = arith.constant 0 : index
    %c14 = arith.constant 14 : index
    %c0_69 = arith.constant 0 : index
    %271 = vector.load %arg9[%c0_68, %c14, %c0_69] : memref<8x16x128xf32, #tpu.memory_space<vmem>>, vector<8x1x128xf32>
    %272 = vector.shape_cast %271 : vector<8x1x128xf32> to vector<8x128xf32>
    %273 = vector.shape_cast %270 : vector<8x128xf32> to vector<8x1x128xf32>
    tpu.vector_store %arg9[%c0_68, %c14, %c0_69], %273 {strides = array<i32>} : memref<8x16x128xf32, #tpu.memory_space<vmem>>, vector<8x1x128xf32>,
    %c14_i32 = arith.constant 14 : i32
    %274 = arith.addi %11, %c14_i32 : i32
    %c8_i32_70 = arith.constant 8 : i32
    %275 = arith.cmpi slt, %274, %c8_i32_70 : i32
    %276 = arith.extui %275 : i1 to i32
    %277 = arith.sitofp %276 : i32 to f32
    %278 = vector.broadcast %277 : f32 to vector<8x128xf32>
    %279 = arith.mulf %270, %278 : vector<8x128xf32>
    %280 = arith.addf %262, %279 : vector<8x128xf32>
    %281 = arith.subf %266, %270 : vector<8x128xf32>
    %282 = vector.extract_strided_slice %8 {offsets = [0, 15, 0], sizes = [8, 1, 128], strides = [1, 1, 1]} : vector<8x16x128xf32> to vector<8x1x128xf32>
    %283 = vector.shape_cast %282 : vector<8x1x128xf32> to vector<8x128xf32>
    %284 = arith.addf %281, %283 : vector<8x128xf32>
    %cst_71 = arith.constant 1.000000e+00 : f32
    %285 = vector.broadcast %cst_71 : f32 to vector<8x128xf32>
    %286 = arith.cmpf oge, %284, %285 : vector<8x128xf32>
    %287 = arith.extui %286 : vector<8x128xi1> to vector<8x128xi32>
    %288 = arith.sitofp %287 : vector<8x128xi32> to vector<8x128xf32>
    %c0_72 = arith.constant 0 : index
    %c15 = arith.constant 15 : index
    %c0_73 = arith.constant 0 : index
    %289 = vector.load %arg9[%c0_72, %c15, %c0_73] : memref<8x16x128xf32, #tpu.memory_space<vmem>>, vector<8x1x128xf32>
    %290 = vector.shape_cast %289 : vector<8x1x128xf32> to vector<8x128xf32>
    %291 = vector.shape_cast %288 : vector<8x128xf32> to vector<8x1x128xf32>
    tpu.vector_store %arg9[%c0_72, %c15, %c0_73], %291 {strides = array<i32>} : memref<8x16x128xf32, #tpu.memory_space<vmem>>, vector<8x1x128xf32>,
    %c15_i32 = arith.constant 15 : i32
    %292 = arith.addi %11, %c15_i32 : i32
    %c8_i32_74 = arith.constant 8 : i32
    %293 = arith.cmpi slt, %292, %c8_i32_74 : i32
    %294 = arith.extui %293 : i1 to i32
    %295 = arith.sitofp %294 : i32 to f32
    %296 = vector.broadcast %295 : f32 to vector<8x128xf32>
    %297 = arith.mulf %288, %296 : vector<8x128xf32>
    %298 = arith.addf %280, %297 : vector<8x128xf32>
    %299 = arith.subf %284, %288 : vector<8x128xf32>
    %c0_75 = arith.constant 0 : index
    %c0_76 = arith.constant 0 : index
    %300 = vector.load %arg7[%c0_75, %c0_76] : memref<8x128xf32, #tpu.memory_space<vmem>>, vector<8x128xf32>
    tpu.vector_store %arg7[%c0_75, %c0_76], %299 {strides = array<i32>} : memref<8x128xf32, #tpu.memory_space<vmem>>, vector<8x128xf32>,
    %c0_77 = arith.constant 0 : index
    %c0_78 = arith.constant 0 : index
    %301 = vector.load %arg8[%c0_77, %c0_78] : memref<8x128xf32, #tpu.memory_space<vmem>>, vector<8x128xf32>
    tpu.vector_store %arg8[%c0_77, %c0_78], %298 {strides = array<i32>} : memref<8x128xf32, #tpu.memory_space<vmem>>, vector<8x128xf32>,
    %c0_79 = arith.constant 0 : index
    %c0_80 = arith.constant 0 : index
    %c0_81 = arith.constant 0 : index
    %302 = vector.load %arg9[%c0_79, %c0_80, %c0_81] : memref<8x16x128xf32, #tpu.memory_space<vmem>>, vector<8x16x128xf32>
    %303 = arith.truncf %302 : vector<8x16x128xf32> to vector<8x16x128xbf16>
    %c0_82 = arith.constant 0 : index
    %c0_83 = arith.constant 0 : index
    %c0_84 = arith.constant 0 : index
    %304 = vector.load %arg5[%c0_82, %c0_83, %c0_84] : memref<8x16x128xbf16, #tpu.memory_space<vmem>>, vector<8x16x128xbf16>
    tpu.vector_store %arg5[%c0_82, %c0_83, %c0_84], %303 {strides = array<i32>} : memref<8x16x128xbf16, #tpu.memory_space<vmem>>, vector<8x16x128xbf16>,
    %c0_i32_85 = arith.constant 0 : i32
    %305 = arith.cmpi eq, %arg1, %c0_i32_85 : i32
    %306 = arith.extui %305 : i1 to i32
    %c0_i32_86 = arith.constant 0 : i32
    %307 = arith.cmpi ne, %306, %c0_i32_86 : i32
    scf.if %307 {
      %c0_87 = arith.constant 0 : index
      %c0_88 = arith.constant 0 : index
      %308 = vector.load %arg6[%c0_87, %c0_88] : memref<8x128xf32, #tpu.memory_space<vmem>>, vector<8x128xf32>
      tpu.vector_store %arg6[%c0_87, %c0_88], %298 {strides = array<i32>} : memref<8x128xf32, #tpu.memory_space<vmem>>, vector<8x128xf32>,
    } else {
    }
    return
  }
  func.func @transform_0(%arg0: i32, %arg1: i32) -> (i32, i32, i32) {
    %c0_i32 = arith.constant 0 : i32
    %c0_i32_0 = arith.constant 0 : i32
    return %arg0, %arg1, %c0_i32 : i32, i32, i32
  }
  func.func @transform_1(%arg0: i32, %arg1: i32) -> (i32, i32) {
    %c0_i32 = arith.constant 0 : i32
    %c0_i32_0 = arith.constant 0 : i32
    %c0_i32_1 = arith.constant 0 : i32
    return %c0_i32, %c0_i32_0 : i32, i32
  }
  func.func @transform_2(%arg0: i32, %arg1: i32) -> (i32, i32) {
    %c0_i32 = arith.constant 0 : i32
    %c0_i32_0 = arith.constant 0 : i32
    %c0_i32_1 = arith.constant 0 : i32
    return %c0_i32, %c0_i32_0 : i32, i32
  }
  func.func @transform_3(%arg0: i32, %arg1: i32) -> (i32, i32, i32) {
    %c0_i32 = arith.constant 0 : i32
    %c0_i32_0 = arith.constant 0 : i32
    return %arg0, %arg1, %c0_i32 : i32, i32, i32
  }
  func.func @transform_4(%arg0: i32, %arg1: i32) -> (i32, i32) {
    %c0_i32 = arith.constant 0 : i32
    %c0_i32_0 = arith.constant 0 : i32
    return %arg0, %c0_i32 : i32, i32
  }
}

</mosaic_0001>

<llo_original>
// kernel: linear_bn1d_forward.1
$region0: #{linear_bn1d_forward.1}
  #allocation0 [shape = 'u32[]', space=smem, size = 0x4, offset = 0x4, fixed_abs, tag = 'smem constant byte address 0x4 - core index']
  #allocation1 [shape = 'u32[72,128]{1,0:T(1,128)}', space=vmem, size = 0x9000, scoped, tag = 'internal scratch']
  #allocation2 [shape = 'f32[8,128]{1,0:T(8,128)}', space=vmem, size = 0x1000, scoped, tag = 'scratch operand']
  #allocation3 [shape = 'f32[8,128]{1,0:T(8,128)}', space=vmem, size = 0x1000, scoped, tag = 'scratch operand']
  #allocation4 [shape = 'f32[8,16,128]{2,1,0:T(8,128)}', space=vmem, size = 0x10000, scoped, tag = 'scratch operand']
  %s0 = inlined_call_operand.vmem [shape: bf16[8,16,32], index: 0, kind: input, shape index: {}]
  %s1 = inlined_call_operand.vmem [shape: f32[32,128], index: 1, kind: input, shape index: {}]
  %s2 = inlined_call_operand.vmem [shape: f32[1,128], index: 2, kind: input, shape index: {}]
  %s3 = inlined_call_operand.vmem [shape: bf16[8,16,128], index: 3, kind: output, shape index: {0}]
  %s4 = inlined_call_operand.hbm [shape: f32[8,128], index: 4, kind: output, shape index: {1}]
  %5 = xla_tuple %s3, %s4
  %s6 = sld [smem:[#allocation0]]
  $region38: #{linear_bn1d_forward.1} parent=0
    _
  %s8 = ssub.s32 1, %s6
  %s9 = scalar_select 0, %s8, %s6
  $region1: #{linear_bn1d_forward.1} parent=0
    #allocation5 [shape = 'u8[4096]{0}', space=vmem, size = 0x1000, scoped, tag = 'output window, operand 1, single buffered']
    #allocation6 [shape = 's32[1]{0}', space=sflag, size = 0x4, scoped, tag = 'scoped memory for linear_bn1d_forward.1']
    %10 = vsyncpa [#allocation6], 0
    // Predicated region
    $region2: #{linear_bn1d_forward.1} parent=1 // pred_check
      _
    $region3: #{linear_bn1d_forward.1} parent=1 // pred_check_branch
      %12 = sbr.rel (0) target = $region5
    $region4: #{linear_bn1d_forward.1} parent=1 // pred_region
      _
    $region5: #{linear_bn1d_forward.1} parent=1 // pred_fallthru
      _
    // Predicated region
    $region6: #{linear_bn1d_forward.1} parent=1 // pred_check
      _
    $region7: #{linear_bn1d_forward.1} parent=1 // pred_check_branch
      %14 = sbr.rel (0) target = $region9
    $region8: #{linear_bn1d_forward.1} parent=1 // pred_region
      _
    $region9: #{linear_bn1d_forward.1} parent=1 // pred_fallthru
      _
    // Predicated region
    $region10: #{linear_bn1d_forward.1} parent=1 // pred_check
      _
    $region11: #{linear_bn1d_forward.1} parent=1 // pred_check_branch
      %16 = sbr.rel (0) target = $region13
    $region12: #{linear_bn1d_forward.1} parent=1 // pred_region
      _
    $region13: #{linear_bn1d_forward.1} parent=1 // pred_fallthru
      _
    %p17 = scmp.eq.s32.totalorder 0, 0
    // Predicated region
    $region14: #{linear_bn1d_forward.1} parent=1 // pred_check
      %p18 = pneg %p17
    $region15: #{linear_bn1d_forward.1} parent=1 // pred_check_branch
      %20 = sbr.rel (%p18) target = $region17
    $region16: #{linear_bn1d_forward.1} parent=1 // pred_region
      %v21 = vld [vmem:[%s2] sm:$0x1]
      %v23 = vperm.slane %v21, 0
      %25 = vst [vmem:[#allocation2] sm:$0xff] %v23
      %26 = vst [vmem:[#allocation3] sm:$0xff] 0.0
    $region17: #{linear_bn1d_forward.1} parent=1 // pred_fallthru
      _
    %v27 = vld [vmem:[%s0] sm:$0xf]
    %v28 = vld [vmem:[%s0 + $0x4] sm:$0xf]
    %v29 = vld [vmem:[%s0 + $0x8] sm:$0xf]
    %v30 = vld [vmem:[%s0 + $0xc] sm:$0xf]
    %v31 = vld [vmem:[%s0 + $0x10] sm:$0xf]
    %v32 = vld [vmem:[%s0 + $0x14] sm:$0xf]
    %v33 = vld [vmem:[%s0 + $0x18] sm:$0xf]
    %v34 = vld [vmem:[%s0 + $0x1c] sm:$0xf]
    %v35 = vld [vmem:[%s0 + $0x20] sm:$0xf]
    %v36 = vld [vmem:[%s0 + $0x24] sm:$0xf]
    %v37 = vld [vmem:[%s0 + $0x28] sm:$0xf]
    %v38 = vld [vmem:[%s0 + $0x2c] sm:$0xf]
    %v39 = vld [vmem:[%s0 + $0x30] sm:$0xf]
    %v40 = vld [vmem:[%s0 + $0x34] sm:$0xf]
    %v41 = vld [vmem:[%s0 + $0x38] sm:$0xf]
    %v42 = vld [vmem:[%s0 + $0x3c] sm:$0xf]
    %v43 = vunpack.c.l.bf16 %v27
    %v44 = vunpack.c.l.bf16 %v28
    %v45 = vunpack.c.l.bf16 %v29
    %v46 = vunpack.c.l.bf16 %v30
    %v47 = vunpack.c.l.bf16 %v31
    %v48 = vunpack.c.l.bf16 %v32
    %v49 = vunpack.c.l.bf16 %v33
    %v50 = vunpack.c.l.bf16 %v34
    %v51 = vunpack.c.l.bf16 %v35
    %v52 = vunpack.c.l.bf16 %v36
    %v53 = vunpack.c.l.bf16 %v37
    %v54 = vunpack.c.l.bf16 %v38
    %v55 = vunpack.c.l.bf16 %v39
    %v56 = vunpack.c.l.bf16 %v40
    %v57 = vunpack.c.l.bf16 %v41
    %v58 = vunpack.c.l.bf16 %v42
    %v59 = vld [vmem:[%s1] sm:$0xff]
    %v60 = vld [vmem:[%s1 + $0x8] sm:$0xff]
    %v61 = vld [vmem:[%s1 + $0x10] sm:$0xff]
    %v62 = vld [vmem:[%s1 + $0x18] sm:$0xff]
    %vm63 = vcmask 261120
    %v65 = vsel %vm63, %v43, 0
    %v68 = vsel %vm63, %v44, 0
    %v71 = vsel %vm63, %v45, 0
    %v74 = vsel %vm63, %v46, 0
    %v77 = vsel %vm63, %v47, 0
    %v80 = vsel %vm63, %v48, 0
    %v83 = vsel %vm63, %v49, 0
    %v86 = vsel %vm63, %v50, 0
    %v89 = vsel %vm63, %v51, 0
    %v92 = vsel %vm63, %v52, 0
    %v95 = vsel %vm63, %v53, 0
    %v98 = vsel %vm63, %v54, 0
    %v101 = vsel %vm63, %v55, 0
    %v104 = vsel %vm63, %v56, 0
    %v107 = vsel %vm63, %v57, 0
    %v110 = vsel %vm63, %v58, 0
    %112 = vmatpush.msra.mxu0 0.0
    %113 = vmatpush.msra.mxu0 0.0
    %114 = vmatpush.msra.mxu0 0.0
    %115 = vmatpush.msra.mxu0 0.0
    %116 = vmatpush.msra.mxu0 0.0
    %117 = vmatpush.msra.mxu0 0.0
    %118 = vmatpush.msra.mxu0 0.0
    %119 = vmatpush.msra.mxu0 0.0
    %120 = vmatpush.msra.mxu0 0.0
    %121 = vmatpush.msra.mxu0 0.0
    %122 = vmatpush.msra.mxu0 0.0
    %123 = vmatpush.msra.mxu0 0.0
    %124 = vmatpush.msra.mxu0 %v62
    %125 = vmatpush.msra.mxu0 %v61
    %126 = vmatpush.msra.mxu0 %v60
    %127 = vmatpush.msra.mxu0 %v59
    %128 = vmatmul.f32.gmra.mxu0 %v65
    %v129 = vpop.f32.mrf.mxu0
    %v130 = vadd.f32 0.0, %v129
    %131 = vmatmul.f32.gmra.mxu0 %v68
    %v132 = vpop.f32.mrf.mxu0
    %v133 = vadd.f32 0.0, %v132
    %134 = vmatmul.f32.gmra.mxu0 %v71
    %v135 = vpop.f32.mrf.mxu0
    %v136 = vadd.f32 0.0, %v135
    %137 = vmatmul.f32.gmra.mxu0 %v74
    %v138 = vpop.f32.mrf.mxu0
    %v139 = vadd.f32 0.0, %v138
    %140 = vmatmul.f32.gmra.mxu0 %v77
    %v141 = vpop.f32.mrf.mxu0
    %v142 = vadd.f32 0.0, %v141
    %143 = vmatmul.f32.gmra.mxu0 %v80
    %v144 = vpop.f32.mrf.mxu0
    %v145 = vadd.f32 0.0, %v144
    %146 = vmatmul.f32.gmra.mxu0 %v83
    %v147 = vpop.f32.mrf.mxu0
    %v148 = vadd.f32 0.0, %v147
    %149 = vmatmul.f32.gmra.mxu0 %v86
    %v150 = vpop.f32.mrf.mxu0
    %v151 = vadd.f32 0.0, %v150
    %152 = vmatmul.f32.gmra.mxu0 %v89
    %v153 = vpop.f32.mrf.mxu0
    %v154 = vadd.f32 0.0, %v153
    %155 = vmatmul.f32.gmra.mxu0 %v92
    %v156 = vpop.f32.mrf.mxu0
    %v157 = vadd.f32 0.0, %v156
    %158 = vmatmul.f32.gmra.mxu0 %v95
    %v159 = vpop.f32.mrf.mxu0
    %v160 = vadd.f32 0.0, %v159
    %161 = vmatmul.f32.gmra.mxu0 %v98
    %v162 = vpop.f32.mrf.mxu0
    %v163 = vadd.f32 0.0, %v162
    %164 = vmatmul.f32.gmra.mxu0 %v101
    %v165 = vpop.f32.mrf.mxu0
    %v166 = vadd.f32 0.0, %v165
    %167 = vmatmul.f32.gmra.mxu0 %v104
    %v168 = vpop.f32.mrf.mxu0
    %v169 = vadd.f32 0.0, %v168
    %170 = vmatmul.f32.gmra.mxu0 %v107
    %v171 = vpop.f32.mrf.mxu0
    %v172 = vadd.f32 0.0, %v171
    %173 = vmatmul.f32.gmra.mxu0 %v110
    %v174 = vpop.f32.mrf.mxu0
    %v175 = vadd.f32 0.0, %v174
    %176 = vdwg.mxu0
    %v177 = vld [vmem:[#allocation2] sm:$0xff]
    %v178 = vld [vmem:[#allocation3] sm:$0xff]
    %s179 = smul.u32 0, 16
    %v188 = vrot.slane %v136, 7
    %vm189 = vcmask 1041409
    %v190 = vsel %vm189, %v188, %v130
    %v191 = vrot.slane %v142, 6
    %vm192 = vcmask 1042434
    %v193 = vsel %vm192, %v191, %v190
    %v194 = vrot.slane %v148, 5
    %vm195 = vcmask 1043459
    %v196 = vsel %vm195, %v194, %v193
    %v197 = vrot.slane %v154, 4
    %vm198 = vcmask 1044484
    %v199 = vsel %vm198, %v197, %v196
    %v200 = vrot.slane %v160, 3
    %vm201 = vcmask 1045509
    %v202 = vsel %vm201, %v200, %v199
    %v203 = vrot.slane %v166, 2
    %vm204 = vcmask 1046534
    %v205 = vsel %vm204, %v203, %v202
    %v206 = vrot.slane %v172, 1
    %vm207 = vcmask 1047559
    %v208 = vsel %vm207, %v206, %v205
    %v210 = vadd.f32 %v177, %v208
    %vm211 = vcmp.ge.f32.partialorder %v210, 1.0
    %v212 = vsel %vm211, 1, 0
    %v213 = vcvt.s32.f32 %v212
    %v215 = vrot.slane %v213, 1
    %v216 = vrot.slane %v213, 2
    %v217 = vrot.slane %v213, 3
    %v218 = vrot.slane %v213, 4
    %v219 = vrot.slane %v213, 5
    %v220 = vrot.slane %v213, 6
    %v221 = vrot.slane %v213, 7
    %229 = vst [vmem:[#allocation4] sm:$0x1] %v213
    %230 = vst [vmem:[#allocation4 + $0x10] sm:$0x1] %v215
    %231 = vst [vmem:[#allocation4 + $0x20] sm:$0x1] %v216
    %232 = vst [vmem:[#allocation4 + $0x30] sm:$0x1] %v217
    %233 = vst [vmem:[#allocation4 + $0x40] sm:$0x1] %v218
    %234 = vst [vmem:[#allocation4 + $0x50] sm:$0x1] %v219
    %235 = vst [vmem:[#allocation4 + $0x60] sm:$0x1] %v220
    %236 = vst [vmem:[#allocation4 + $0x70] sm:$0x1] %v221
    %p237 = scmp.lt.s32.totalorder %s179, 8
    %s238 = scalar_select %p237, 1, 0
    %s239 = scvt.s32.f32 %s238
    %v240 = vstv %s239
    %v241 = vmul.f32 %v213, %v240
    %v242 = vadd.f32 %v178, %v241
    %v243 = vsub.f32 %v210, %v213
    %v244 = vrot.slane %v130, 1
    %v245 = vsel %vm189, %v136, %v244
    %v246 = vrot.slane %v142, 7
    %v247 = vsel %vm192, %v246, %v245
    %v248 = vrot.slane %v148, 6
    %v249 = vsel %vm195, %v248, %v247
    %v250 = vrot.slane %v154, 5
    %v251 = vsel %vm198, %v250, %v249
    %v252 = vrot.slane %v160, 4
    %v253 = vsel %vm201, %v252, %v251
    %v254 = vrot.slane %v166, 3
    %v255 = vsel %vm204, %v254, %v253
    %v256 = vrot.slane %v172, 2
    %v257 = vsel %vm207, %v256, %v255
    %v259 = vadd.f32 %v243, %v257
    %vm260 = vcmp.ge.f32.partialorder %v259, 1.0
    %v261 = vsel %vm260, 1, 0
    %v262 = vcvt.s32.f32 %v261
    %v264 = vrot.slane %v262, 1
    %v265 = vrot.slane %v262, 2
    %v266 = vrot.slane %v262, 3
    %v267 = vrot.slane %v262, 4
    %v268 = vrot.slane %v262, 5
    %v269 = vrot.slane %v262, 6
    %v270 = vrot.slane %v262, 7
    %278 = vst [vmem:[#allocation4 + $0x1] sm:$0x1] %v262
    %279 = vst [vmem:[#allocation4 + $0x11] sm:$0x1] %v264
    %280 = vst [vmem:[#allocation4 + $0x21] sm:$0x1] %v265
    %281 = vst [vmem:[#allocation4 + $0x31] sm:$0x1] %v266
    %282 = vst [vmem:[#allocation4 + $0x41] sm:$0x1] %v267
    %283 = vst [vmem:[#allocation4 + $0x51] sm:$0x1] %v268
    %284 = vst [vmem:[#allocation4 + $0x61] sm:$0x1] %v269
    %285 = vst [vmem:[#allocation4 + $0x71] sm:$0x1] %v270
    %s286 = sadd.s32 %s179, 1
    %p287 = scmp.lt.s32.totalorder %s286, 8
    %s288 = scalar_select %p287, 1, 0
    %s289 = scvt.s32.f32 %s288
    %v290 = vstv %s289
    %v291 = vmul.f32 %v262, %v290
    %v292 = vadd.f32 %v242, %v291
    %v293 = vsub.f32 %v259, %v262
    %v294 = vrot.slane %v130, 2
    %v295 = vrot.slane %v136, 1
    %v296 = vsel %vm189, %v295, %v294
    %v297 = vsel %vm192, %v142, %v296
    %v298 = vrot.slane %v148, 7
    %v299 = vsel %vm195, %v298, %v297
    %v300 = vrot.slane %v154, 6
    %v301 = vsel %vm198, %v300, %v299
    %v302 = vrot.slane %v160, 5
    %v303 = vsel %vm201, %v302, %v301
    %v304 = vrot.slane %v166, 4
    %v305 = vsel %vm204, %v304, %v303
    %v306 = vrot.slane %v172, 3
    %v307 = vsel %vm207, %v306, %v305
    %v309 = vadd.f32 %v293, %v307
    %vm310 = vcmp.ge.f32.partialorder %v309, 1.0
    %v311 = vsel %vm310, 1, 0
    %v312 = vcvt.s32.f32 %v311
    %v314 = vrot.slane %v312, 1
    %v315 = vrot.slane %v312, 2
    %v316 = vrot.slane %v312, 3
    %v317 = vrot.slane %v312, 4
    %v318 = vrot.slane %v312, 5
    %v319 = vrot.slane %v312, 6
    %v320 = vrot.slane %v312, 7
    %328 = vst [vmem:[#allocation4 + $0x2] sm:$0x1] %v312
    %329 = vst [vmem:[#allocation4 + $0x12] sm:$0x1] %v314
    %330 = vst [vmem:[#allocation4 + $0x22] sm:$0x1] %v315
    %331 = vst [vmem:[#allocation4 + $0x32] sm:$0x1] %v316
    %332 = vst [vmem:[#allocation4 + $0x42] sm:$0x1] %v317
    %333 = vst [vmem:[#allocation4 + $0x52] sm:$0x1] %v318
    %334 = vst [vmem:[#allocation4 + $0x62] sm:$0x1] %v319
    %335 = vst [vmem:[#allocation4 + $0x72] sm:$0x1] %v320
    %s336 = sadd.s32 %s179, 2
    %p337 = scmp.lt.s32.totalorder %s336, 8
    %s338 = scalar_select %p337, 1, 0
    %s339 = scvt.s32.f32 %s338
    %v340 = vstv %s339
    %v341 = vmul.f32 %v312, %v340
    %v342 = vadd.f32 %v292, %v341
    %v343 = vsub.f32 %v309, %v312
    %v344 = vrot.slane %v130, 3
    %v345 = vrot.slane %v136, 2
    %v346 = vsel %vm189, %v345, %v344
    %v347 = vrot.slane %v142, 1
    %v348 = vsel %vm192, %v347, %v346
    %v349 = vsel %vm195, %v148, %v348
    %v350 = vrot.slane %v154, 7
    %v351 = vsel %vm198, %v350, %v349
    %v352 = vrot.slane %v160, 6
    %v353 = vsel %vm201, %v352, %v351
    %v354 = vrot.slane %v166, 5
    %v355 = vsel %vm204, %v354, %v353
    %v356 = vrot.slane %v172, 4
    %v357 = vsel %vm207, %v356, %v355
    %v359 = vadd.f32 %v343, %v357
    %vm360 = vcmp.ge.f32.partialorder %v359, 1.0
    %v361 = vsel %vm360, 1, 0
    %v362 = vcvt.s32.f32 %v361
    %v364 = vrot.slane %v362, 1
    %v365 = vrot.slane %v362, 2
    %v366 = vrot.slane %v362, 3
    %v367 = vrot.slane %v362, 4
    %v368 = vrot.slane %v362, 5
    %v369 = vrot.slane %v362, 6
    %v370 = vrot.slane %v362, 7
    %378 = vst [vmem:[#allocation4 + $0x3] sm:$0x1] %v362
    %379 = vst [vmem:[#allocation4 + $0x13] sm:$0x1] %v364
    %380 = vst [vmem:[#allocation4 + $0x23] sm:$0x1] %v365
    %381 = vst [vmem:[#allocation4 + $0x33] sm:$0x1] %v366
    %382 = vst [vmem:[#allocation4 + $0x43] sm:$0x1] %v367
    %383 = vst [vmem:[#allocation4 + $0x53] sm:$0x1] %v368
    %384 = vst [vmem:[#allocation4 + $0x63] sm:$0x1] %v369
    %385 = vst [vmem:[#allocation4 + $0x73] sm:$0x1] %v370
    %s386 = sadd.s32 %s179, 3
    %p387 = scmp.lt.s32.totalorder %s386, 8
    %s388 = scalar_select %p387, 1, 0
    %s389 = scvt.s32.f32 %s388
    %v390 = vstv %s389
    %v391 = vmul.f32 %v362, %v390
    %v392 = vadd.f32 %v342, %v391
    %v393 = vsub.f32 %v359, %v362
    %v394 = vrot.slane %v130, 4
    %v395 = vrot.slane %v136, 3
    %v396 = vsel %vm189, %v395, %v394
    %v397 = vrot.slane %v142, 2
    %v398 = vsel %vm192, %v397, %v396
    %v399 = vrot.slane %v148, 1
    %v400 = vsel %vm195, %v399, %v398
    %v401 = vsel %vm198, %v154, %v400
    %v402 = vrot.slane %v160, 7
    %v403 = vsel %vm201, %v402, %v401
    %v404 = vrot.slane %v166, 6
    %v405 = vsel %vm204, %v404, %v403
    %v406 = vrot.slane %v172, 5
    %v407 = vsel %vm207, %v406, %v405
    %v409 = vadd.f32 %v393, %v407
    %vm410 = vcmp.ge.f32.partialorder %v409, 1.0
    %v411 = vsel %vm410, 1, 0
    %v412 = vcvt.s32.f32 %v411
    %v414 = vrot.slane %v412, 1
    %v415 = vrot.slane %v412, 2
    %v416 = vrot.slane %v412, 3
    %v417 = vrot.slane %v412, 4
    %v418 = vrot.slane %v412, 5
    %v419 = vrot.slane %v412, 6
    %v420 = vrot.slane %v412, 7
    %428 = vst [vmem:[#allocation4 + $0x4] sm:$0x1] %v412
    %429 = vst [vmem:[#allocation4 + $0x14] sm:$0x1] %v414
    %430 = vst [vmem:[#allocation4 + $0x24] sm:$0x1] %v415
    %431 = vst [vmem:[#allocation4 + $0x34] sm:$0x1] %v416
    %432 = vst [vmem:[#allocation4 + $0x44] sm:$0x1] %v417
    %433 = vst [vmem:[#allocation4 + $0x54] sm:$0x1] %v418
    %434 = vst [vmem:[#allocation4 + $0x64] sm:$0x1] %v419
    %435 = vst [vmem:[#allocation4 + $0x74] sm:$0x1] %v420
    %s436 = sadd.s32 %s179, 4
    %p437 = scmp.lt.s32.totalorder %s436, 8
    %s438 = scalar_select %p437, 1, 0
    %s439 = scvt.s32.f32 %s438
    %v440 = vstv %s439
    %v441 = vmul.f32 %v412, %v440
    %v442 = vadd.f32 %v392, %v441
    %v443 = vsub.f32 %v409, %v412
    %v444 = vrot.slane %v130, 5
    %v445 = vrot.slane %v136, 4
    %v446 = vsel %vm189, %v445, %v444
    %v447 = vrot.slane %v142, 3
    %v448 = vsel %vm192, %v447, %v446
    %v449 = vrot.slane %v148, 2
    %v450 = vsel %vm195, %v449, %v448
    %v451 = vrot.slane %v154, 1
    %v452 = vsel %vm198, %v451, %v450
    %v453 = vsel %vm201, %v160, %v452
    %v454 = vrot.slane %v166, 7
    %v455 = vsel %vm204, %v454, %v453
    %v456 = vrot.slane %v172, 6
    %v457 = vsel %vm207, %v456, %v455
    %v459 = vadd.f32 %v443, %v457
    %vm460 = vcmp.ge.f32.partialorder %v459, 1.0
    %v461 = vsel %vm460, 1, 0
    %v462 = vcvt.s32.f32 %v461
    %v464 = vrot.slane %v462, 1
    %v465 = vrot.slane %v462, 2
    %v466 = vrot.slane %v462, 3
    %v467 = vrot.slane %v462, 4
    %v468 = vrot.slane %v462, 5
    %v469 = vrot.slane %v462, 6
    %v470 = vrot.slane %v462, 7
    %478 = vst [vmem:[#allocation4 + $0x5] sm:$0x1] %v462
    %479 = vst [vmem:[#allocation4 + $0x15] sm:$0x1] %v464
    %480 = vst [vmem:[#allocation4 + $0x25] sm:$0x1] %v465
    %481 = vst [vmem:[#allocation4 + $0x35] sm:$0x1] %v466
    %482 = vst [vmem:[#allocation4 + $0x45] sm:$0x1] %v467
    %483 = vst [vmem:[#allocation4 + $0x55] sm:$0x1] %v468
    %484 = vst [vmem:[#allocation4 + $0x65] sm:$0x1] %v469
    %485 = vst [vmem:[#allocation4 + $0x75] sm:$0x1] %v470
    %s486 = sadd.s32 %s179, 5
    %p487 = scmp.lt.s32.totalorder %s486, 8
    %s488 = scalar_select %p487, 1, 0
    %s489 = scvt.s32.f32 %s488
    %v490 = vstv %s489
    %v491 = vmul.f32 %v462, %v490
    %v492 = vadd.f32 %v442, %v491
    %v493 = vsub.f32 %v459, %v462
    %v494 = vrot.slane %v130, 6
    %v495 = vrot.slane %v136, 5
    %v496 = vsel %vm189, %v495, %v494
    %v497 = vrot.slane %v142, 4
    %v498 = vsel %vm192, %v497, %v496
    %v499 = vrot.slane %v148, 3
    %v500 = vsel %vm195, %v499, %v498
    %v501 = vrot.slane %v154, 2
    %v502 = vsel %vm198, %v501, %v500
    %v503 = vrot.slane %v160, 1
    %v504 = vsel %vm201, %v503, %v502
    %v505 = vsel %vm204, %v166, %v504
    %v506 = vrot.slane %v172, 7
    %v507 = vsel %vm207, %v506, %v505
    %v509 = vadd.f32 %v493, %v507
    %vm510 = vcmp.ge.f32.partialorder %v509, 1.0
    %v511 = vsel %vm510, 1, 0
    %v512 = vcvt.s32.f32 %v511
    %v514 = vrot.slane %v512, 1
    %v515 = vrot.slane %v512, 2
    %v516 = vrot.slane %v512, 3
    %v517 = vrot.slane %v512, 4
    %v518 = vrot.slane %v512, 5
    %v519 = vrot.slane %v512, 6
    %v520 = vrot.slane %v512, 7
    %528 = vst [vmem:[#allocation4 + $0x6] sm:$0x1] %v512
    %529 = vst [vmem:[#allocation4 + $0x16] sm:$0x1] %v514
    %530 = vst [vmem:[#allocation4 + $0x26] sm:$0x1] %v515
    %531 = vst [vmem:[#allocation4 + $0x36] sm:$0x1] %v516
    %532 = vst [vmem:[#allocation4 + $0x46] sm:$0x1] %v517
    %533 = vst [vmem:[#allocation4 + $0x56] sm:$0x1] %v518
    %534 = vst [vmem:[#allocation4 + $0x66] sm:$0x1] %v519
    %535 = vst [vmem:[#allocation4 + $0x76] sm:$0x1] %v520
    %s536 = sadd.s32 %s179, 6
    %p537 = scmp.lt.s32.totalorder %s536, 8
    %s538 = scalar_select %p537, 1, 0
    %s539 = scvt.s32.f32 %s538
    %v540 = vstv %s539
    %v541 = vmul.f32 %v512, %v540
    %v542 = vadd.f32 %v492, %v541
    %v543 = vsub.f32 %v509, %v512
    %v544 = vrot.slane %v130, 7
    %v545 = vrot.slane %v136, 6
    %v546 = vsel %vm189, %v545, %v544
    %v547 = vrot.slane %v142, 5
    %v548 = vsel %vm192, %v547, %v546
    %v549 = vrot.slane %v148, 4
    %v550 = vsel %vm195, %v549, %v548
    %v551 = vrot.slane %v154, 3
    %v552 = vsel %vm198, %v551, %v550
    %v553 = vrot.slane %v160, 2
    %v554 = vsel %vm201, %v553, %v552
    %v555 = vrot.slane %v166, 1
    %v556 = vsel %vm204, %v555, %v554
    %v557 = vsel %vm207, %v172, %v556
    %v559 = vadd.f32 %v543, %v557
    %vm560 = vcmp.ge.f32.partialorder %v559, 1.0
    %v561 = vsel %vm560, 1, 0
    %v562 = vcvt.s32.f32 %v561
    %v564 = vrot.slane %v562, 1
    %v565 = vrot.slane %v562, 2
    %v566 = vrot.slane %v562, 3
    %v567 = vrot.slane %v562, 4
    %v568 = vrot.slane %v562, 5
    %v569 = vrot.slane %v562, 6
    %v570 = vrot.slane %v562, 7
    %578 = vst [vmem:[#allocation4 + $0x7] sm:$0x1] %v562
    %579 = vst [vmem:[#allocation4 + $0x17] sm:$0x1] %v564
    %580 = vst [vmem:[#allocation4 + $0x27] sm:$0x1] %v565
    %581 = vst [vmem:[#allocation4 + $0x37] sm:$0x1] %v566
    %582 = vst [vmem:[#allocation4 + $0x47] sm:$0x1] %v567
    %583 = vst [vmem:[#allocation4 + $0x57] sm:$0x1] %v568
    %584 = vst [vmem:[#allocation4 + $0x67] sm:$0x1] %v569
    %585 = vst [vmem:[#allocation4 + $0x77] sm:$0x1] %v570
    %s586 = sadd.s32 %s179, 7
    %p587 = scmp.lt.s32.totalorder %s586, 8
    %s588 = scalar_select %p587, 1, 0
    %s589 = scvt.s32.f32 %s588
    %v590 = vstv %s589
    %v591 = vmul.f32 %v562, %v590
    %v592 = vadd.f32 %v542, %v591
    %v593 = vsub.f32 %v559, %v562
    %v602 = vrot.slane %v139, 7
    %v603 = vsel %vm189, %v602, %v133
    %v604 = vrot.slane %v145, 6
    %v605 = vsel %vm192, %v604, %v603
    %v606 = vrot.slane %v151, 5
    %v607 = vsel %vm195, %v606, %v605
    %v608 = vrot.slane %v157, 4
    %v609 = vsel %vm198, %v608, %v607
    %v610 = vrot.slane %v163, 3
    %v611 = vsel %vm201, %v610, %v609
    %v612 = vrot.slane %v169, 2
    %v613 = vsel %vm204, %v612, %v611
    %v614 = vrot.slane %v175, 1
    %v615 = vsel %vm207, %v614, %v613
    %v617 = vadd.f32 %v593, %v615
    %vm618 = vcmp.ge.f32.partialorder %v617, 1.0
    %v619 = vsel %vm618, 1, 0
    %v620 = vcvt.s32.f32 %v619
    %v622 = vrot.slane %v620, 1
    %v623 = vrot.slane %v620, 2
    %v624 = vrot.slane %v620, 3
    %v625 = vrot.slane %v620, 4
    %v626 = vrot.slane %v620, 5
    %v627 = vrot.slane %v620, 6
    %v628 = vrot.slane %v620, 7
    %636 = vst [vmem:[#allocation4 + $0x8] sm:$0x1] %v620
    %637 = vst [vmem:[#allocation4 + $0x18] sm:$0x1] %v622
    %638 = vst [vmem:[#allocation4 + $0x28] sm:$0x1] %v623
    %639 = vst [vmem:[#allocation4 + $0x38] sm:$0x1] %v624
    %640 = vst [vmem:[#allocation4 + $0x48] sm:$0x1] %v625
    %641 = vst [vmem:[#allocation4 + $0x58] sm:$0x1] %v626
    %642 = vst [vmem:[#allocation4 + $0x68] sm:$0x1] %v627
    %643 = vst [vmem:[#allocation4 + $0x78] sm:$0x1] %v628
    %s644 = sadd.s32 %s179, 8
    %p645 = scmp.lt.s32.totalorder %s644, 8
    %s646 = scalar_select %p645, 1, 0
    %s647 = scvt.s32.f32 %s646
    %v648 = vstv %s647
    %v649 = vmul.f32 %v620, %v648
    %v650 = vadd.f32 %v592, %v649
    %v651 = vsub.f32 %v617, %v620
    %v652 = vrot.slane %v133, 1
    %v653 = vsel %vm189, %v139, %v652
    %v654 = vrot.slane %v145, 7
    %v655 = vsel %vm192, %v654, %v653
    %v656 = vrot.slane %v151, 6
    %v657 = vsel %vm195, %v656, %v655
    %v658 = vrot.slane %v157, 5
    %v659 = vsel %vm198, %v658, %v657
    %v660 = vrot.slane %v163, 4
    %v661 = vsel %vm201, %v660, %v659
    %v662 = vrot.slane %v169, 3
    %v663 = vsel %vm204, %v662, %v661
    %v664 = vrot.slane %v175, 2
    %v665 = vsel %vm207, %v664, %v663
    %v667 = vadd.f32 %v651, %v665
    %vm668 = vcmp.ge.f32.partialorder %v667, 1.0
    %v669 = vsel %vm668, 1, 0
    %v670 = vcvt.s32.f32 %v669
    %v672 = vrot.slane %v670, 1
    %v673 = vrot.slane %v670, 2
    %v674 = vrot.slane %v670, 3
    %v675 = vrot.slane %v670, 4
    %v676 = vrot.slane %v670, 5
    %v677 = vrot.slane %v670, 6
    %v678 = vrot.slane %v670, 7
    %686 = vst [vmem:[#allocation4 + $0x9] sm:$0x1] %v670
    %687 = vst [vmem:[#allocation4 + $0x19] sm:$0x1] %v672
    %688 = vst [vmem:[#allocation4 + $0x29] sm:$0x1] %v673
    %689 = vst [vmem:[#allocation4 + $0x39] sm:$0x1] %v674
    %690 = vst [vmem:[#allocation4 + $0x49] sm:$0x1] %v675
    %691 = vst [vmem:[#allocation4 + $0x59] sm:$0x1] %v676
    %692 = vst [vmem:[#allocation4 + $0x69] sm:$0x1] %v677
    %693 = vst [vmem:[#allocation4 + $0x79] sm:$0x1] %v678
    %s694 = sadd.s32 %s179, 9
    %p695 = scmp.lt.s32.totalorder %s694, 8
    %s696 = scalar_select %p695, 1, 0
    %s697 = scvt.s32.f32 %s696
    %v698 = vstv %s697
    %v699 = vmul.f32 %v670, %v698
    %v700 = vadd.f32 %v650, %v699
    %v701 = vsub.f32 %v667, %v670
    %v702 = vrot.slane %v133, 2
    %v703 = vrot.slane %v139, 1
    %v704 = vsel %vm189, %v703, %v702
    %v705 = vsel %vm192, %v145, %v704
    %v706 = vrot.slane %v151, 7
    %v707 = vsel %vm195, %v706, %v705
    %v708 = vrot.slane %v157, 6
    %v709 = vsel %vm198, %v708, %v707
    %v710 = vrot.slane %v163, 5
    %v711 = vsel %vm201, %v710, %v709
    %v712 = vrot.slane %v169, 4
    %v713 = vsel %vm204, %v712, %v711
    %v714 = vrot.slane %v175, 3
    %v715 = vsel %vm207, %v714, %v713
    %v717 = vadd.f32 %v701, %v715
    %vm718 = vcmp.ge.f32.partialorder %v717, 1.0
    %v719 = vsel %vm718, 1, 0
    %v720 = vcvt.s32.f32 %v719
    %v722 = vrot.slane %v720, 1
    %v723 = vrot.slane %v720, 2
    %v724 = vrot.slane %v720, 3
    %v725 = vrot.slane %v720, 4
    %v726 = vrot.slane %v720, 5
    %v727 = vrot.slane %v720, 6
    %v728 = vrot.slane %v720, 7
    %736 = vst [vmem:[#allocation4 + $0xa] sm:$0x1] %v720
    %737 = vst [vmem:[#allocation4 + $0x1a] sm:$0x1] %v722
    %738 = vst [vmem:[#allocation4 + $0x2a] sm:$0x1] %v723
    %739 = vst [vmem:[#allocation4 + $0x3a] sm:$0x1] %v724
    %740 = vst [vmem:[#allocation4 + $0x4a] sm:$0x1] %v725
    %741 = vst [vmem:[#allocation4 + $0x5a] sm:$0x1] %v726
    %742 = vst [vmem:[#allocation4 + $0x6a] sm:$0x1] %v727
    %743 = vst [vmem:[#allocation4 + $0x7a] sm:$0x1] %v728
    %s744 = sadd.s32 %s179, 10
    %p745 = scmp.lt.s32.totalorder %s744, 8
    %s746 = scalar_select %p745, 1, 0
    %s747 = scvt.s32.f32 %s746
    %v748 = vstv %s747
    %v749 = vmul.f32 %v720, %v748
    %v750 = vadd.f32 %v700, %v749
    %v751 = vsub.f32 %v717, %v720
    %v752 = vrot.slane %v133, 3
    %v753 = vrot.slane %v139, 2
    %v754 = vsel %vm189, %v753, %v752
    %v755 = vrot.slane %v145, 1
    %v756 = vsel %vm192, %v755, %v754
    %v757 = vsel %vm195, %v151, %v756
    %v758 = vrot.slane %v157, 7
    %v759 = vsel %vm198, %v758, %v757
    %v760 = vrot.slane %v163, 6
    %v761 = vsel %vm201, %v760, %v759
    %v762 = vrot.slane %v169, 5
    %v763 = vsel %vm204, %v762, %v761
    %v764 = vrot.slane %v175, 4
    %v765 = vsel %vm207, %v764, %v763
    %v767 = vadd.f32 %v751, %v765
    %vm768 = vcmp.ge.f32.partialorder %v767, 1.0
    %v769 = vsel %vm768, 1, 0
    %v770 = vcvt.s32.f32 %v769
    %v772 = vrot.slane %v770, 1
    %v773 = vrot.slane %v770, 2
    %v774 = vrot.slane %v770, 3
    %v775 = vrot.slane %v770, 4
    %v776 = vrot.slane %v770, 5
    %v777 = vrot.slane %v770, 6
    %v778 = vrot.slane %v770, 7
    %786 = vst [vmem:[#allocation4 + $0xb] sm:$0x1] %v770
    %787 = vst [vmem:[#allocation4 + $0x1b] sm:$0x1] %v772
    %788 = vst [vmem:[#allocation4 + $0x2b] sm:$0x1] %v773
    %789 = vst [vmem:[#allocation4 + $0x3b] sm:$0x1] %v774
    %790 = vst [vmem:[#allocation4 + $0x4b] sm:$0x1] %v775
    %791 = vst [vmem:[#allocation4 + $0x5b] sm:$0x1] %v776
    %792 = vst [vmem:[#allocation4 + $0x6b] sm:$0x1] %v777
    %793 = vst [vmem:[#allocation4 + $0x7b] sm:$0x1] %v778
    %s794 = sadd.s32 %s179, 11
    %p795 = scmp.lt.s32.totalorder %s794, 8
    %s796 = scalar_select %p795, 1, 0
    %s797 = scvt.s32.f32 %s796
    %v798 = vstv %s797
    %v799 = vmul.f32 %v770, %v798
    %v800 = vadd.f32 %v750, %v799
    %v801 = vsub.f32 %v767, %v770
    %v802 = vrot.slane %v133, 4
    %v803 = vrot.slane %v139, 3
    %v804 = vsel %vm189, %v803, %v802
    %v805 = vrot.slane %v145, 2
    %v806 = vsel %vm192, %v805, %v804
    %v807 = vrot.slane %v151, 1
    %v808 = vsel %vm195, %v807, %v806
    %v809 = vsel %vm198, %v157, %v808
    %v810 = vrot.slane %v163, 7
    %v811 = vsel %vm201, %v810, %v809
    %v812 = vrot.slane %v169, 6
    %v813 = vsel %vm204, %v812, %v811
    %v814 = vrot.slane %v175, 5
    %v815 = vsel %vm207, %v814, %v813
    %v817 = vadd.f32 %v801, %v815
    %vm818 = vcmp.ge.f32.partialorder %v817, 1.0
    %v819 = vsel %vm818, 1, 0
    %v820 = vcvt.s32.f32 %v819
    %v822 = vrot.slane %v820, 1
    %v823 = vrot.slane %v820, 2
    %v824 = vrot.slane %v820, 3
    %v825 = vrot.slane %v820, 4
    %v826 = vrot.slane %v820, 5
    %v827 = vrot.slane %v820, 6
    %v828 = vrot.slane %v820, 7
    %836 = vst [vmem:[#allocation4 + $0xc] sm:$0x1] %v820
    %837 = vst [vmem:[#allocation4 + $0x1c] sm:$0x1] %v822
    %838 = vst [vmem:[#allocation4 + $0x2c] sm:$0x1] %v823
    %839 = vst [vmem:[#allocation4 + $0x3c] sm:$0x1] %v824
    %840 = vst [vmem:[#allocation4 + $0x4c] sm:$0x1] %v825
    %841 = vst [vmem:[#allocation4 + $0x5c] sm:$0x1] %v826
    %842 = vst [vmem:[#allocation4 + $0x6c] sm:$0x1] %v827
    %843 = vst [vmem:[#allocation4 + $0x7c] sm:$0x1] %v828
    %s844 = sadd.s32 %s179, 12
    %p845 = scmp.lt.s32.totalorder %s844, 8
    %s846 = scalar_select %p845, 1, 0
    %s847 = scvt.s32.f32 %s846
    %v848 = vstv %s847
    %v849 = vmul.f32 %v820, %v848
    %v850 = vadd.f32 %v800, %v849
    %v851 = vsub.f32 %v817, %v820
    %v852 = vrot.slane %v133, 5
    %v853 = vrot.slane %v139, 4
    %v854 = vsel %vm189, %v853, %v852
    %v855 = vrot.slane %v145, 3
    %v856 = vsel %vm192, %v855, %v854
    %v857 = vrot.slane %v151, 2
    %v858 = vsel %vm195, %v857, %v856
    %v859 = vrot.slane %v157, 1
    %v860 = vsel %vm198, %v859, %v858
    %v861 = vsel %vm201, %v163, %v860
    %v862 = vrot.slane %v169, 7
    %v863 = vsel %vm204, %v862, %v861
    %v864 = vrot.slane %v175, 6
    %v865 = vsel %vm207, %v864, %v863
    %v867 = vadd.f32 %v851, %v865
    %vm868 = vcmp.ge.f32.partialorder %v867, 1.0
    %v869 = vsel %vm868, 1, 0
    %v870 = vcvt.s32.f32 %v869
    %v872 = vrot.slane %v870, 1
    %v873 = vrot.slane %v870, 2
    %v874 = vrot.slane %v870, 3
    %v875 = vrot.slane %v870, 4
    %v876 = vrot.slane %v870, 5
    %v877 = vrot.slane %v870, 6
    %v878 = vrot.slane %v870, 7
    %886 = vst [vmem:[#allocation4 + $0xd] sm:$0x1] %v870
    %887 = vst [vmem:[#allocation4 + $0x1d] sm:$0x1] %v872
    %888 = vst [vmem:[#allocation4 + $0x2d] sm:$0x1] %v873
    %889 = vst [vmem:[#allocation4 + $0x3d] sm:$0x1] %v874
    %890 = vst [vmem:[#allocation4 + $0x4d] sm:$0x1] %v875
    %891 = vst [vmem:[#allocation4 + $0x5d] sm:$0x1] %v876
    %892 = vst [vmem:[#allocation4 + $0x6d] sm:$0x1] %v877
    %893 = vst [vmem:[#allocation4 + $0x7d] sm:$0x1] %v878
    %s894 = sadd.s32 %s179, 13
    %p895 = scmp.lt.s32.totalorder %s894, 8
    %s896 = scalar_select %p895, 1, 0
    %s897 = scvt.s32.f32 %s896
    %v898 = vstv %s897
    %v899 = vmul.f32 %v870, %v898
    %v900 = vadd.f32 %v850, %v899
    %v901 = vsub.f32 %v867, %v870
    %v902 = vrot.slane %v133, 6
    %v903 = vrot.slane %v139, 5
    %v904 = vsel %vm189, %v903, %v902
    %v905 = vrot.slane %v145, 4
    %v906 = vsel %vm192, %v905, %v904
    %v907 = vrot.slane %v151, 3
    %v908 = vsel %vm195, %v907, %v906
    %v909 = vrot.slane %v157, 2
    %v910 = vsel %vm198, %v909, %v908
    %v911 = vrot.slane %v163, 1
    %v912 = vsel %vm201, %v911, %v910
    %v913 = vsel %vm204, %v169, %v912
    %v914 = vrot.slane %v175, 7
    %v915 = vsel %vm207, %v914, %v913
    %v917 = vadd.f32 %v901, %v915
    %vm918 = vcmp.ge.f32.partialorder %v917, 1.0
    %v919 = vsel %vm918, 1, 0
    %v920 = vcvt.s32.f32 %v919
    %v922 = vrot.slane %v920, 1
    %v923 = vrot.slane %v920, 2
    %v924 = vrot.slane %v920, 3
    %v925 = vrot.slane %v920, 4
    %v926 = vrot.slane %v920, 5
    %v927 = vrot.slane %v920, 6
    %v928 = vrot.slane %v920, 7
    %936 = vst [vmem:[#allocation4 + $0xe] sm:$0x1] %v920
    %937 = vst [vmem:[#allocation4 + $0x1e] sm:$0x1] %v922
    %938 = vst [vmem:[#allocation4 + $0x2e] sm:$0x1] %v923
    %939 = vst [vmem:[#allocation4 + $0x3e] sm:$0x1] %v924
    %940 = vst [vmem:[#allocation4 + $0x4e] sm:$0x1] %v925
    %941 = vst [vmem:[#allocation4 + $0x5e] sm:$0x1] %v926
    %942 = vst [vmem:[#allocation4 + $0x6e] sm:$0x1] %v927
    %943 = vst [vmem:[#allocation4 + $0x7e] sm:$0x1] %v928
    %s944 = sadd.s32 %s179, 14
    %p945 = scmp.lt.s32.totalorder %s944, 8
    %s946 = scalar_select %p945, 1, 0
    %s947 = scvt.s32.f32 %s946
    %v948 = vstv %s947
    %v949 = vmul.f32 %v920, %v948
    %v950 = vadd.f32 %v900, %v949
    %v951 = vsub.f32 %v917, %v920
    %v952 = vrot.slane %v133, 7
    %v953 = vrot.slane %v139, 6
    %v954 = vsel %vm189, %v953, %v952
    %v955 = vrot.slane %v145, 5
    %v956 = vsel %vm192, %v955, %v954
    %v957 = vrot.slane %v151, 4
    %v958 = vsel %vm195, %v957, %v956
    %v959 = vrot.slane %v157, 3
    %v960 = vsel %vm198, %v959, %v958
    %v961 = vrot.slane %v163, 2
    %v962 = vsel %vm201, %v961, %v960
    %v963 = vrot.slane %v169, 1
    %v964 = vsel %vm204, %v963, %v962
    %v965 = vsel %vm207, %v175, %v964
    %v967 = vadd.f32 %v951, %v965
    %vm968 = vcmp.ge.f32.partialorder %v967, 1.0
    %v969 = vsel %vm968, 1, 0
    %v970 = vcvt.s32.f32 %v969
    %v972 = vrot.slane %v970, 1
    %v973 = vrot.slane %v970, 2
    %v974 = vrot.slane %v970, 3
    %v975 = vrot.slane %v970, 4
    %v976 = vrot.slane %v970, 5
    %v977 = vrot.slane %v970, 6
    %v978 = vrot.slane %v970, 7
    %986 = vst [vmem:[#allocation4 + $0xf] sm:$0x1] %v970
    %987 = vst [vmem:[#allocation4 + $0x1f] sm:$0x1] %v972
    %988 = vst [vmem:[#allocation4 + $0x2f] sm:$0x1] %v973
    %989 = vst [vmem:[#allocation4 + $0x3f] sm:$0x1] %v974
    %990 = vst [vmem:[#allocation4 + $0x4f] sm:$0x1] %v975
    %991 = vst [vmem:[#allocation4 + $0x5f] sm:$0x1] %v976
    %992 = vst [vmem:[#allocation4 + $0x6f] sm:$0x1] %v977
    %993 = vst [vmem:[#allocation4 + $0x7f] sm:$0x1] %v978
    %s994 = sadd.s32 %s179, 15
    %p995 = scmp.lt.s32.totalorder %s994, 8
    %s996 = scalar_select %p995, 1, 0
    %s997 = scvt.s32.f32 %s996
    %v998 = vstv %s997
    %v999 = vmul.f32 %v970, %v998
    %v1000 = vadd.f32 %v950, %v999
    %v1001 = vsub.f32 %v967, %v970
    %1002 = vst [vmem:[#allocation2] sm:$0xff] %v1001
    %1003 = vst [vmem:[#allocation3] sm:$0xff] %v1000
    %v1004 = vld [vmem:[#allocation4] sm:$0xff]
    %v1005 = vld [vmem:[#allocation4 + $0x8] sm:$0xff]
    %v1006 = vld [vmem:[#allocation4 + $0x10] sm:$0xff]
    %v1007 = vld [vmem:[#allocation4 + $0x18] sm:$0xff]
    %v1008 = vld [vmem:[#allocation4 + $0x20] sm:$0xff]
    %v1009 = vld [vmem:[#allocation4 + $0x28] sm:$0xff]
    %v1010 = vld [vmem:[#allocation4 + $0x30] sm:$0xff]
    %v1011 = vld [vmem:[#allocation4 + $0x38] sm:$0xff]
    %v1012 = vld [vmem:[#allocation4 + $0x40] sm:$0xff]
    %v1013 = vld [vmem:[#allocation4 + $0x48] sm:$0xff]
    %v1014 = vld [vmem:[#allocation4 + $0x50] sm:$0xff]
    %v1015 = vld [vmem:[#allocation4 + $0x58] sm:$0xff]
    %v1016 = vld [vmem:[#allocation4 + $0x60] sm:$0xff]
    %v1017 = vld [vmem:[#allocation4 + $0x68] sm:$0xff]
    %v1018 = vld [vmem:[#allocation4 + $0x70] sm:$0xff]
    %v1019 = vld [vmem:[#allocation4 + $0x78] sm:$0xff]
    %v1020 = vpack.c.bf16 %v1004, %v1004
    %v1021 = vpack.c.bf16 %v1005, %v1005
    %v1022 = vpack.c.bf16 %v1006, %v1006
    %v1023 = vpack.c.bf16 %v1007, %v1007
    %v1024 = vpack.c.bf16 %v1008, %v1008
    %v1025 = vpack.c.bf16 %v1009, %v1009
    %v1026 = vpack.c.bf16 %v1010, %v1010
    %v1027 = vpack.c.bf16 %v1011, %v1011
    %v1028 = vpack.c.bf16 %v1012, %v1012
    %v1029 = vpack.c.bf16 %v1013, %v1013
    %v1030 = vpack.c.bf16 %v1014, %v1014
    %v1031 = vpack.c.bf16 %v1015, %v1015
    %v1032 = vpack.c.bf16 %v1016, %v1016
    %v1033 = vpack.c.bf16 %v1017, %v1017
    %v1034 = vpack.c.bf16 %v1018, %v1018
    %v1035 = vpack.c.bf16 %v1019, %v1019
    %1036 = vst [vmem:[%s3] sm:$0xf] %v1020
    %1037 = vst [vmem:[%s3 + $0x4] sm:$0xf] %v1021
    %1038 = vst [vmem:[%s3 + $0x8] sm:$0xf] %v1022
    %1039 = vst [vmem:[%s3 + $0xc] sm:$0xf] %v1023
    %1040 = vst [vmem:[%s3 + $0x10] sm:$0xf] %v1024
    %1041 = vst [vmem:[%s3 + $0x14] sm:$0xf] %v1025
    %1042 = vst [vmem:[%s3 + $0x18] sm:$0xf] %v1026
    %1043 = vst [vmem:[%s3 + $0x1c] sm:$0xf] %v1027
    %1044 = vst [vmem:[%s3 + $0x20] sm:$0xf] %v1028
    %1045 = vst [vmem:[%s3 + $0x24] sm:$0xf] %v1029
    %1046 = vst [vmem:[%s3 + $0x28] sm:$0xf] %v1030
    %1047 = vst [vmem:[%s3 + $0x2c] sm:$0xf] %v1031
    %1048 = vst [vmem:[%s3 + $0x30] sm:$0xf] %v1032
    %1049 = vst [vmem:[%s3 + $0x34] sm:$0xf] %v1033
    %1050 = vst [vmem:[%s3 + $0x38] sm:$0xf] %v1034
    %1051 = vst [vmem:[%s3 + $0x3c] sm:$0xf] %v1035
    // Predicated region
    $region18: #{linear_bn1d_forward.1} parent=1 // pred_check
      %p1052 = pneg %p17
    $region19: #{linear_bn1d_forward.1} parent=1 // pred_check_branch
      %1054 = sbr.rel (%p1052) target = $region21
    $region20: #{linear_bn1d_forward.1} parent=1 // pred_region
      %1055 = vst [vmem:[#allocation5] sm:$0xff] %v1000
    $region21: #{linear_bn1d_forward.1} parent=1 // pred_fallthru
      _
    // Predicated region
    $region22: #{linear_bn1d_forward.1} parent=1 // pred_check
      _
    $region23: #{linear_bn1d_forward.1} parent=1 // pred_check_branch
      %1057 = sbr.rel (0) target = $region25
    $region24: #{linear_bn1d_forward.1} parent=1 // pred_region
      _
    $region25: #{linear_bn1d_forward.1} parent=1 // pred_fallthru
      _
    // Predicated region
    $region26: #{linear_bn1d_forward.1} parent=1 // pred_check
      _
    $region27: #{linear_bn1d_forward.1} parent=1 // pred_check_branch
      %1059 = sbr.rel (0) target = $region29
    $region28: #{linear_bn1d_forward.1} parent=1 // pred_region
      %1061 = vsyncadd [#allocation6], 0
      %s1063 = sshll.u32 [#allocation5], 4
      %s1064 = int_to_ptr.vmem [resolvable:$true] %s1063
      %s1065 = sshll.u32 %s4, 4
      %s1066 = int_to_ptr.hbm [resolvable:$true] %s1065
      %1068 = dma.vmem_to_hbm [thread:$0]  %s1064, 128, %s1066, [#allocation6]
    $region29: #{linear_bn1d_forward.1} parent=1 // pred_fallthru
      _
    // Predicated region
    $region30: #{linear_bn1d_forward.1} parent=1 // pred_check
      _
    $region31: #{linear_bn1d_forward.1} parent=1 // pred_check_branch
      %1070 = sbr.rel (0) target = $region33
    $region32: #{linear_bn1d_forward.1} parent=1 // pred_region
      _
    $region33: #{linear_bn1d_forward.1} parent=1 // pred_fallthru
      _
    // Predicated region
    $region34: #{linear_bn1d_forward.1} parent=1 // pred_check
      _
    $region35: #{linear_bn1d_forward.1} parent=1 // pred_check_branch
      %1072 = sbr.rel (0) target = $region37
    $region36: #{linear_bn1d_forward.1} parent=1 // pred_region
      %1074 = dma.done [#allocation6], 128
    $region37: #{linear_bn1d_forward.1} parent=1 // pred_fallthru
      _
    %1075 = vsyncpa [#allocation6], 1

</llo_original>
